<compile_context>
chip_gen: v5e
topology: v5e:2x2
jax: 0.10.0
libtpu: 0.0.40
codegen_flags: <defaults>
</compile_context>

<pallas_src>
import functools

import jax
import jax.numpy as jnp
from jax import lax
from jax.experimental import pallas as pl
from jax.experimental.pallas import tpu as pltpu


def _decoder_kernel(B, S, H, Cp, V, T,
                    enc_ref, eenc_ref, gidec0_ref,
                    whid_ref, vw_ref,
                    wihc_ref, bih_ref, bhh_ref,
                    fcw_ref, fcb_ref, embwih_ref,
                    out_ref):
    """Full greedy decode loop for one batch.

    enc_ref    : (B, S, H)   encoder outputs (f32)
    eenc_ref   : (B, S, H)   hoisted  enc @ W_attn[H:] + b_attn  (f32)
    gidec0_ref : (B, 3H)     embed[cls] @ W_ih[:H]  (initial decoder-input term)
    whid_ref   : (H, 4H)     fused [W_attn[:H] | W_hh]            (bf16)
    vw_ref     : (1, H)      attention v weight (row, VPU path)
    wihc_ref   : (H, 3H)     GRU W_ih^T rows acting on the context (bf16)
    bih/bhh    : (1, 3H)     GRU biases (f32)
    fcw_ref    : (H, Cp)     output projection, classes zero-padded (bf16)
    fcb_ref    : (1, Cp)     output bias, padded columns = -1e30 (f32)
    embwih_ref : (V, 3H)     embed @ W_ih[:H]  (greedy feedback, bf16)
    out_ref    : (T*B, Cp)   per-step logits, row order (t, b), lane+sublane dense
    """
    # Loop-invariant loads: weights + encoder tensors stay resident across steps.
    enc = enc_ref[...]
    eenc = eenc_ref[...]
    whid = whid_ref[...]
    wihc = wihc_ref[...]
    bih = bih_ref[...]
    bhh = bhh_ref[...]
    fcw = fcw_ref[...]
    fcb = fcb_ref[...]
    embwih = embwih_ref[...]

    # Hoisted broadcasts / iotas (JAX does not CSE broadcast_in_dim in the loop).
    vwb = jnp.broadcast_to(vw_ref[...].reshape(1, 1, H), (B, S, H))
    cls_iota = lax.broadcasted_iota(jnp.int32, (B, Cp), 1)
    voc_iota = lax.broadcasted_iota(jnp.int32, (B, V), 1)

    # hidden = encoder_output[:, -1, :]  (torch: unsqueeze(0) -> GRU h0)
    hidden = enc[:, S - 1, :]
    gi_dec = gidec0_ref[...]                                            # (B, 3H)

    logit_rows = []
    # T is small & static -> fully unrolled Python loop (scheduler visibility).
    # TODO(synk): at larger T switch to lax.fori_loop(unroll=2..4) with a VMEM
    # scratch accumulator and keep weights as per-iteration ref reads.
    for _ in range(T):
        # ---- fused hidden projection: [e_hid | hidden@W_hh] in one 4H-wide dot
        hp = jnp.dot(hidden.astype(jnp.bfloat16), whid,
                     preferred_element_type=jnp.float32)                # (B, 4H)
        e_hid = hp[:, :H]
        gh = hp[:, H:] + bhh                                            # (B, 3H)

        # ---- attention: energy = tanh(fc(cat([hidden_rep, enc]))) -------------
        energy = jnp.tanh(e_hid[:, None, :] + eenc)                     # (B, S, H)
        # v-projection as VPU multiply + lane reduce (no N=1 MXU dot / relayout)
        attn = jnp.sum(energy * vwb, axis=-1)                           # (B, S)
        m = jnp.max(attn, axis=-1, keepdims=True)
        e = jnp.exp(attn - m)
        scores = e * pl.reciprocal(jnp.sum(e, axis=-1, keepdims=True),
                                   approx=True)                         # softmax(-1)

        # context = bmm(scores.unsqueeze(1), enc).squeeze(1) as VPU mul + sublane reduce
        context = jnp.sum(scores[:, :, None] * enc, axis=1)             # (B, H)

        # ---- GRU cell (PyTorch gate order r, z, n) -----------------------------
        # decoder-input contribution was folded into gi_dec (previous step's
        # onehot @ emb_wih); only the context half needs a dot here.
        gi = gi_dec + jnp.dot(context.astype(jnp.bfloat16), wihc,
                              preferred_element_type=jnp.float32) + bih  # (B, 3H)
        rz = jax.nn.sigmoid(gi[:, :2 * H] + gh[:, :2 * H])              # fused r|z
        r = rz[:, :H]
        z = rz[:, H:]
        n = jnp.tanh(gi[:, 2 * H:] + r * gh[:, 2 * H:])
        hidden = (1.0 - z) * n + z * hidden                             # (B, H)

        # ---- output projection (collected, stored once after the loop) --------
        logits = jnp.dot(hidden.astype(jnp.bfloat16), fcw,
                         preferred_element_type=jnp.float32) + fcb      # (B, Cp)
        logit_rows.append(logits)

        # ---- greedy feedback: gi_dec = onehot(argmax(logits)) @ emb_wih --------
        # argmax via masked-iota min (first max wins, like torch.argmax); padded
        # classes carry -1e30 bias so they can never win. This dot is off the
        # next step's critical path (only the context dot depends on attention).
        mx = jnp.max(logits, axis=-1, keepdims=True)
        idx = jnp.min(jnp.where(logits == mx, cls_iota, Cp),
                      axis=-1, keepdims=True)                           # (B, 1)
        onehot = (voc_iota == idx).astype(jnp.bfloat16)                 # (B, V)
        gi_dec = jnp.dot(onehot, embwih,
                         preferred_element_type=jnp.float32)            # (B, 3H)

    # Single lane+sublane-dense store: (T*B, Cp) = one (8, 128) tile at test size.
    out_ref[...] = jnp.concatenate(logit_rows, axis=0).astype(out_ref.dtype)


def date_conversion_forward(input_ids, attention_mask, params, target_len, cls_token_id):
    B, S = input_ids.shape
    embed = params['embed']                  # (V, H)
    V, H = embed.shape
    C = params['fc_b'].shape[-1]
    Cp = max(128, ((C + 127) // 128) * 128)  # lane-dense logits width

    # ---- synthetic encoder (glue, plain JAX) ----
    # TODO(synk): pretrained AutoModel encoder has no Pallas equivalent; replaced
    # by a deterministic embedding + linear + tanh encoder, masked by attention_mask.
    emb = embed[input_ids]                                                   # (B, S, H)
    enc_out = jnp.tanh(emb @ params['enc_w'] + params['enc_b'])
    enc_out = (enc_out * attention_mask[:, :, None].astype(enc_out.dtype)).astype(jnp.float32)
    # dropout(p=0.2) is identity in eval mode.

    # ---- hoisted loop-invariant attention term: enc @ W_attn[H:] + b_attn ----
    attn_w = params['attn_w']                                                # (2H, H)
    eenc = (enc_out @ attn_w[H:, :] + params['attn_b']).astype(jnp.float32)  # (B, S, H)

    # ---- fuse hidden-side weights: [W_attn[:H] | W_hh] -> (H, 4H), bf16 ----
    w_hid = jnp.concatenate([attn_w[:H, :], params['gru_whh']],
                            axis=1).astype(jnp.bfloat16)

    # ---- fold embedding into the decoder-input half of W_ih ----
    wih = params['gru_wih']                                                  # (2H, 3H)
    emb_wih = (embed.astype(jnp.float32) @ wih[:H, :]).astype(jnp.bfloat16)  # (V, 3H)
    wih_ctx = wih[H:, :].astype(jnp.bfloat16)                                # (H, 3H)
    gi_dec0 = jnp.broadcast_to((embed[cls_token_id] @ wih[:H, :])[None, :],
                               (B, 3 * H)).astype(jnp.float32)               # (B, 3H)

    # ---- pad output classes to a lane-dense width (-1e30 bias keeps argmax valid) ----
    fcw_p = jnp.pad(params['fc_w'], ((0, 0), (0, Cp - C))).astype(jnp.bfloat16)
    fcb_p = jnp.pad(params['fc_b'], ((0, 0), (0, Cp - C)),
                    constant_values=-1e30).astype(jnp.float32)

    v_row = params['v_w'].reshape(1, H).astype(jnp.float32)                  # (1, H)

    kernel = functools.partial(_decoder_kernel, B, S, H, Cp, V, target_len)

    def full(shape):
        return pl.BlockSpec(shape, lambda i, _n=len(shape): (0,) * _n)

    out = pl.pallas_call(
        kernel,
        out_shape=jax.ShapeDtypeStruct((target_len * B, Cp), jnp.float32),
        grid_spec=pltpu.PrefetchScalarGridSpec(
            num_scalar_prefetch=0,
            grid=(1,),                       # whole decode loop runs in-kernel
            in_specs=[
                full((B, S, H)),             # encoder output
                full((B, S, H)),             # hoisted enc @ W_attn[H:] + b_attn
                full((B, 3 * H)),            # initial decoder-input GRU term
                full((H, 4 * H)),            # fused [W_attn[:H] | W_hh]  (bf16)
                full((1, H)),                # attention v weight (row)
                full((H, 3 * H)),            # GRU W_ih^T (context half, bf16)
                full((1, 3 * H)),            # GRU b_ih
                full((1, 3 * H)),            # GRU b_hh
                full((H, Cp)),               # output fc weight (padded, bf16)
                full((1, Cp)),               # output fc bias (padded, -1e30)
                full((V, 3 * H)),            # embed @ W_ih[:H] (feedback, bf16)
            ],
            out_specs=pl.BlockSpec((target_len * B, Cp), lambda i: (0, 0)),
        ),
        compiler_params=pltpu.CompilerParams(
            dimension_semantics=("arbitrary",)),
        # TODO(synk): on v7x shard the batch across the two TensorCores with a
        # leading 'parallel' grid axis once per-core batch blocks are
        # (8,128)-tile aligned, keep emb_wih/enc in HBM (memory_space=pl.ANY +
        # double-buffered DMA) at realistic V/S, and set vmem_limit_bytes for
        # the 64 MiB VMEM budget.
    )(enc_out, eenc, gi_dec0,
      w_hid, v_row,
      wih_ctx, params['gru_bih'], params['gru_bhh'],
      fcw_p, fcb_p, emb_wih)

    # rows are ordered (t, b) -> torch.stack(outputs, dim=1) == (B, target_len, C)
    out = out.reshape(target_len, B, Cp)
    return jnp.transpose(out, (1, 0, 2))[:, :, :C]


if __name__ == "__main__":
    B, S, H, C, V, T = 2, 8, 32, 16, 32, 4
    cls_token_id = 1

    key = jax.random.PRNGKey(0)
    ks = jax.random.split(key, 14)

    def init(k, shape, scale=0.1):
        return (scale * jax.random.normal(k, shape)).astype(jnp.float32)

    params = dict(
        embed=init(ks[0], (V, H)),
        enc_w=init(ks[1], (H, H)),
        enc_b=init(ks[2], (H,)),
        attn_w=init(ks[3], (2 * H, H)),
        attn_b=init(ks[4], (1, H)),
        v_w=init(ks[5], (H, 1)),
        gru_wih=init(ks[6], (2 * H, 3 * H)),
        gru_whh=init(ks[7], (H, 3 * H)),
        gru_bih=init(ks[8], (1, 3 * H)),
        gru_bhh=init(ks[9], (1, 3 * H)),
        fc_w=init(ks[10], (H, C)),
        fc_b=init(ks[11], (1, C)),
    )

    input_ids = jax.random.randint(ks[12], (B, S), 0, V)
    attention_mask = jnp.ones((B, S), jnp.int32)

    logits = date_conversion_forward(input_ids, attention_mask, params, T, cls_token_id)
    logits = jax.block_until_ready(logits)
    assert logits.shape == (B, T, C), logits.shape
    assert bool(jnp.all(jnp.isfinite(logits)))
    print("KERNEL_OK")
</pallas_src>

<mosaic_0001>
module attributes {stable_mosaic.version = 11 : i64} {
  func.func @_decoder_kernel(%arg0: i32, %arg1: memref<2x8x32xf32, #tpu.memory_space<vmem>>, %arg2: memref<2x8x32xf32, #tpu.memory_space<vmem>>, %arg3: memref<2x96xf32, #tpu.memory_space<vmem>>, %arg4: memref<32x128xbf16, #tpu.memory_space<vmem>>, %arg5: memref<1x32xf32, #tpu.memory_space<vmem>>, %arg6: memref<32x96xbf16, #tpu.memory_space<vmem>>, %arg7: memref<1x96xf32, #tpu.memory_space<vmem>>, %arg8: memref<1x96xf32, #tpu.memory_space<vmem>>, %arg9: memref<32x128xbf16, #tpu.memory_space<vmem>>, %arg10: memref<1x128xf32, #tpu.memory_space<vmem>>, %arg11: memref<32x96xbf16, #tpu.memory_space<vmem>>, %arg12: memref<8x128xf32, #tpu.memory_space<vmem>>) attributes {dimension_semantics = [#tpu.dimension_semantics<arbitrary>], iteration_bounds = array<i64: 1>, scalar_prefetch = 0 : i64, scratch_operands = 0 : i64, tpu.core_type = #tpu.core_type<tc>, window_params = [{pipeline_mode = #tpu.pipeline_mode<synchronous>, transform_indices = @transform_0, window_bounds = array<i64: 2, 8, 32>}, {pipeline_mode = #tpu.pipeline_mode<synchronous>, transform_indices = @transform_1, window_bounds = array<i64: 2, 8, 32>}, {pipeline_mode = #tpu.pipeline_mode<synchronous>, transform_indices = @transform_2, window_bounds = array<i64: 2, 96>}, {pipeline_mode = #tpu.pipeline_mode<synchronous>, transform_indices = @transform_3, window_bounds = array<i64: 32, 128>}, {pipeline_mode = #tpu.pipeline_mode<synchronous>, transform_indices = @transform_4, window_bounds = array<i64: 1, 32>}, {pipeline_mode = #tpu.pipeline_mode<synchronous>, transform_indices = @transform_5, window_bounds = array<i64: 32, 96>}, {pipeline_mode = #tpu.pipeline_mode<synchronous>, transform_indices = @transform_6, window_bounds = array<i64: 1, 96>}, {pipeline_mode = #tpu.pipeline_mode<synchronous>, transform_indices = @transform_7, window_bounds = array<i64: 1, 96>}, {pipeline_mode = #tpu.pipeline_mode<synchronous>, transform_indices = @transform_8, window_bounds = array<i64: 32, 128>}, {pipeline_mode = #tpu.pipeline_mode<synchronous>, transform_indices = @transform_9, window_bounds = array<i64: 1, 128>}, {pipeline_mode = #tpu.pipeline_mode<synchronous>, transform_indices = @transform_10, window_bounds = array<i64: 32, 96>}, {pipeline_mode = #tpu.pipeline_mode<synchronous>, transform_indices = @transform_11, window_bounds = array<i64: 8, 128>}]} {
    %c0 = arith.constant 0 : index
    %c0_0 = arith.constant 0 : index
    %c0_1 = arith.constant 0 : index
    %0 = vector.load %arg1[%c0, %c0_0, %c0_1] : memref<2x8x32xf32, #tpu.memory_space<vmem>>, vector<2x8x32xf32>
    %c0_2 = arith.constant 0 : index
    %c0_3 = arith.constant 0 : index
    %c0_4 = arith.constant 0 : index
    %1 = vector.load %arg2[%c0_2, %c0_3, %c0_4] : memref<2x8x32xf32, #tpu.memory_space<vmem>>, vector<2x8x32xf32>
    %c0_5 = arith.constant 0 : index
    %c0_6 = arith.constant 0 : index
    %2 = vector.load %arg4[%c0_5, %c0_6] : memref<32x128xbf16, #tpu.memory_space<vmem>>, vector<32x128xbf16>
    %c0_7 = arith.constant 0 : index
    %c0_8 = arith.constant 0 : index
    %3 = vector.load %arg6[%c0_7, %c0_8] : memref<32x96xbf16, #tpu.memory_space<vmem>>, vector<32x96xbf16>
    %c0_9 = arith.constant 0 : index
    %c0_10 = arith.constant 0 : index
    %4 = vector.load %arg7[%c0_9, %c0_10] : memref<1x96xf32, #tpu.memory_space<vmem>>, vector<1x96xf32>
    %c0_11 = arith.constant 0 : index
    %c0_12 = arith.constant 0 : index
    %5 = vector.load %arg8[%c0_11, %c0_12] : memref<1x96xf32, #tpu.memory_space<vmem>>, vector<1x96xf32>
    %c0_13 = arith.constant 0 : index
    %c0_14 = arith.constant 0 : index
    %6 = vector.load %arg9[%c0_13, %c0_14] : memref<32x128xbf16, #tpu.memory_space<vmem>>, vector<32x128xbf16>
    %c0_15 = arith.constant 0 : index
    %c0_16 = arith.constant 0 : index
    %7 = vector.load %arg10[%c0_15, %c0_16] : memref<1x128xf32, #tpu.memory_space<vmem>>, vector<1x128xf32>
    %c0_17 = arith.constant 0 : index
    %c0_18 = arith.constant 0 : index
    %8 = vector.load %arg11[%c0_17, %c0_18] : memref<32x96xbf16, #tpu.memory_space<vmem>>, vector<32x96xbf16>
    %c0_19 = arith.constant 0 : index
    %c0_20 = arith.constant 0 : index
    %9 = vector.load %arg5[%c0_19, %c0_20] : memref<1x32xf32, #tpu.memory_space<vmem>>, vector<1x32xf32>
    %10 = vector.shape_cast %9 : vector<1x32xf32> to vector<1x1x32xf32>
    %11 = vector.shape_cast %10 : vector<1x1x32xf32> to vector<1x1x32xf32>
    %12 = vector.broadcast %11 : vector<1x1x32xf32> to vector<2x8x32xf32>
    %13 = tpu.iota {dimensions = array<i32: 1>} : vector<2x128xi32>
    %14 = tpu.iota {dimensions = array<i32: 1>} : vector<2x32xi32>
    %15 = vector.extract_strided_slice %0 {offsets = [0, 7, 0], sizes = [2, 1, 32], strides = [1, 1, 1]} : vector<2x8x32xf32> to vector<2x1x32xf32>
    %16 = vector.shape_cast %15 : vector<2x1x32xf32> to vector<2x32xf32>
    %c0_21 = arith.constant 0 : index
    %c0_22 = arith.constant 0 : index
    %17 = vector.load %arg3[%c0_21, %c0_22] : memref<2x96xf32, #tpu.memory_space<vmem>>, vector<2x96xf32>
    %18 = arith.truncf %16 : vector<2x32xf32> to vector<2x32xbf16>
    %cst = arith.constant dense<0.000000e+00> : vector<2x128xf32>
    %19 = tpu.matmul %18, %2, %cst {dimension_numbers = #tpu.dot_dimension_numbers<[1], [0], [0], [1], [0, 0, 1, 1], [], []>} : vector<2x32xbf16>, vector<32x128xbf16>, vector<2x128xf32> -> vector<2x128xf32>
    %20 = vector.extract_strided_slice %19 {offsets = [0, 0], sizes = [2, 32], strides = [1, 1]} : vector<2x128xf32> to vector<2x32xf32>
    %21 = vector.extract_strided_slice %19 {offsets = [0, 32], sizes = [2, 96], strides = [1, 1]} : vector<2x128xf32> to vector<2x96xf32>
    %22 = vector.broadcast %5 : vector<1x96xf32> to vector<2x96xf32>
    %23 = arith.addf %21, %22 : vector<2x96xf32>
    %24 = vector.shape_cast %20 : vector<2x32xf32> to vector<2x1x32xf32>
    %25 = vector.broadcast %24 : vector<2x1x32xf32> to vector<2x8x32xf32>
    %26 = arith.addf %25, %1 : vector<2x8x32xf32>
    %27 = math.tanh %26 : vector<2x8x32xf32>
    %28 = arith.mulf %27, %12 : vector<2x8x32xf32>
    %cst_23 = arith.constant dense<0.000000e+00> : vector<2x8xf32>
    %29 = vector.multi_reduction <add>, %28, %cst_23 [2] : vector<2x8x32xf32> to vector<2x8xf32>
    %cst_24 = arith.constant dense<0xFF800000> : vector<2xf32>
    %30 = vector.multi_reduction <maximumf>, %29, %cst_24 [1] : vector<2x8xf32> to vector<2xf32>
    %31 = vector.shape_cast %30 : vector<2xf32> to vector<2x1xf32>
    %32 = vector.broadcast %31 : vector<2x1xf32> to vector<2x8xf32>
    %33 = arith.subf %29, %32 : vector<2x8xf32>
    %34 = math.exp %33 : vector<2x8xf32>
    %cst_25 = arith.constant dense<0.000000e+00> : vector<2xf32>
    %35 = vector.multi_reduction <add>, %34, %cst_25 [1] : vector<2x8xf32> to vector<2xf32>
    %36 = vector.shape_cast %35 : vector<2xf32> to vector<2x1xf32>
    %37 = tpu.reciprocal %36 {approx = true} : vector<2x1xf32> -> vector<2x1xf32>
    %38 = vector.broadcast %37 : vector<2x1xf32> to vector<2x8xf32>
    %39 = arith.mulf %34, %38 : vector<2x8xf32>
    %40 = vector.shape_cast %39 : vector<2x8xf32> to vector<2x8x1xf32>
    %41 = vector.broadcast %40 : vector<2x8x1xf32> to vector<2x8x32xf32>
    %42 = arith.mulf %41, %0 : vector<2x8x32xf32>
    %cst_26 = arith.constant dense<0.000000e+00> : vector<2x32xf32>
    %43 = vector.multi_reduction <add>, %42, %cst_26 [1] : vector<2x8x32xf32> to vector<2x32xf32>
    %44 = arith.truncf %43 : vector<2x32xf32> to vector<2x32xbf16>
    %cst_27 = arith.constant dense<0.000000e+00> : vector<2x96xf32>
    %45 = tpu.matmul %44, %3, %cst_27 {dimension_numbers = #tpu.dot_dimension_numbers<[1], [0], [0], [1], [0, 0, 1, 1], [], []>} : vector<2x32xbf16>, vector<32x96xbf16>, vector<2x96xf32> -> vector<2x96xf32>
    %46 = arith.addf %17, %45 : vector<2x96xf32>
    %47 = vector.broadcast %4 : vector<1x96xf32> to vector<2x96xf32>
    %48 = arith.addf %46, %47 : vector<2x96xf32>
    %49 = vector.extract_strided_slice %48 {offsets = [0, 0], sizes = [2, 64], strides = [1, 1]} : vector<2x96xf32> to vector<2x64xf32>
    %50 = vector.extract_strided_slice %23 {offsets = [0, 0], sizes = [2, 64], strides = [1, 1]} : vector<2x96xf32> to vector<2x64xf32>
    %51 = arith.addf %49, %50 : vector<2x64xf32>
    %52 = arith.negf %51 : vector<2x64xf32>
    %53 = math.exp %52 : vector<2x64xf32>
    %cst_28 = arith.constant 1.000000e+00 : f32
    %54 = vector.broadcast %cst_28 : f32 to vector<2x64xf32>
    %55 = arith.addf %54, %53 : vector<2x64xf32>
    %56 = arith.divf %54, %55 : vector<2x64xf32>
    %57 = vector.extract_strided_slice %56 {offsets = [0, 0], sizes = [2, 32], strides = [1, 1]} : vector<2x64xf32> to vector<2x32xf32>
    %58 = vector.extract_strided_slice %56 {offsets = [0, 32], sizes = [2, 32], strides = [1, 1]} : vector<2x64xf32> to vector<2x32xf32>
    %59 = vector.extract_strided_slice %48 {offsets = [0, 64], sizes = [2, 32], strides = [1, 1]} : vector<2x96xf32> to vector<2x32xf32>
    %60 = vector.extract_strided_slice %23 {offsets = [0, 64], sizes = [2, 32], strides = [1, 1]} : vector<2x96xf32> to vector<2x32xf32>
    %61 = arith.mulf %57, %60 : vector<2x32xf32>
    %62 = arith.addf %59, %61 : vector<2x32xf32>
    %63 = math.tanh %62 : vector<2x32xf32>
    %cst_29 = arith.constant 1.000000e+00 : f32
    %64 = vector.broadcast %cst_29 : f32 to vector<2x32xf32>
    %65 = arith.subf %64, %58 : vector<2x32xf32>
    %66 = arith.mulf %65, %63 : vector<2x32xf32>
    %67 = arith.mulf %58, %16 : vector<2x32xf32>
    %68 = arith.addf %66, %67 : vector<2x32xf32>
    %69 = arith.truncf %68 : vector<2x32xf32> to vector<2x32xbf16>
    %cst_30 = arith.constant dense<0.000000e+00> : vector<2x128xf32>
    %70 = tpu.matmul %69, %6, %cst_30 {dimension_numbers = #tpu.dot_dimension_numbers<[1], [0], [0], [1], [0, 0, 1, 1], [], []>} : vector<2x32xbf16>, vector<32x128xbf16>, vector<2x128xf32> -> vector<2x128xf32>
    %71 = vector.broadcast %7 : vector<1x128xf32> to vector<2x128xf32>
    %72 = arith.addf %70, %71 : vector<2x128xf32>
    %cst_31 = arith.constant dense<0xFF800000> : vector<2xf32>
    %73 = vector.multi_reduction <maximumf>, %72, %cst_31 [1] : vector<2x128xf32> to vector<2xf32>
    %74 = vector.shape_cast %73 : vector<2xf32> to vector<2x1xf32>
    %75 = vector.broadcast %74 : vector<2x1xf32> to vector<2x128xf32>
    %76 = arith.cmpf oeq, %72, %75 : vector<2x128xf32>
    %c128_i32 = arith.constant 128 : i32
    %77 = vector.broadcast %c128_i32 : i32 to vector<2x128xi32>
    %78 = arith.select %76, %13, %77 : vector<2x128xi1>, vector<2x128xi32>
    %cst_32 = arith.constant dense<2147483647> : vector<2xi32>
    %79 = vector.multi_reduction <minsi>, %78, %cst_32 [1] : vector<2x128xi32> to vector<2xi32>
    %80 = vector.shape_cast %79 : vector<2xi32> to vector<2x1xi32>
    %81 = vector.broadcast %80 : vector<2x1xi32> to vector<2x32xi32>
    %82 = arith.cmpi eq, %14, %81 : vector<2x32xi32>
    %83 = arith.extui %82 : vector<2x32xi1> to vector<2x32xi32>
    %84 = arith.sitofp %83 : vector<2x32xi32> to vector<2x32xf32>
    %85 = arith.truncf %84 : vector<2x32xf32> to vector<2x32xbf16>
    %cst_33 = arith.constant dense<0.000000e+00> : vector<2x96xf32>
    %86 = tpu.matmul %85, %8, %cst_33 {dimension_numbers = #tpu.dot_dimension_numbers<[1], [0], [0], [1], [0, 0, 1, 1], [], []>} : vector<2x32xbf16>, vector<32x96xbf16>, vector<2x96xf32> -> vector<2x96xf32>
    %87 = arith.truncf %68 : vector<2x32xf32> to vector<2x32xbf16>
    %cst_34 = arith.constant dense<0.000000e+00> : vector<2x128xf32>
    %88 = tpu.matmul %87, %2, %cst_34 {dimension_numbers = #tpu.dot_dimension_numbers<[1], [0], [0], [1], [0, 0, 1, 1], [], []>} : vector<2x32xbf16>, vector<32x128xbf16>, vector<2x128xf32> -> vector<2x128xf32>
    %89 = vector.extract_strided_slice %88 {offsets = [0, 0], sizes = [2, 32], strides = [1, 1]} : vector<2x128xf32> to vector<2x32xf32>
    %90 = vector.extract_strided_slice %88 {offsets = [0, 32], sizes = [2, 96], strides = [1, 1]} : vector<2x128xf32> to vector<2x96xf32>
    %91 = vector.broadcast %5 : vector<1x96xf32> to vector<2x96xf32>
    %92 = arith.addf %90, %91 : vector<2x96xf32>
    %93 = vector.shape_cast %89 : vector<2x32xf32> to vector<2x1x32xf32>
    %94 = vector.broadcast %93 : vector<2x1x32xf32> to vector<2x8x32xf32>
    %95 = arith.addf %94, %1 : vector<2x8x32xf32>
    %96 = math.tanh %95 : vector<2x8x32xf32>
    %97 = arith.mulf %96, %12 : vector<2x8x32xf32>
    %cst_35 = arith.constant dense<0.000000e+00> : vector<2x8xf32>
    %98 = vector.multi_reduction <add>, %97, %cst_35 [2] : vector<2x8x32xf32> to vector<2x8xf32>
    %cst_36 = arith.constant dense<0xFF800000> : vector<2xf32>
    %99 = vector.multi_reduction <maximumf>, %98, %cst_36 [1] : vector<2x8xf32> to vector<2xf32>
    %100 = vector.shape_cast %99 : vector<2xf32> to vector<2x1xf32>
    %101 = vector.broadcast %100 : vector<2x1xf32> to vector<2x8xf32>
    %102 = arith.subf %98, %101 : vector<2x8xf32>
    %103 = math.exp %102 : vector<2x8xf32>
    %cst_37 = arith.constant dense<0.000000e+00> : vector<2xf32>
    %104 = vector.multi_reduction <add>, %103, %cst_37 [1] : vector<2x8xf32> to vector<2xf32>
    %105 = vector.shape_cast %104 : vector<2xf32> to vector<2x1xf32>
    %106 = tpu.reciprocal %105 {approx = true} : vector<2x1xf32> -> vector<2x1xf32>
    %107 = vector.broadcast %106 : vector<2x1xf32> to vector<2x8xf32>
    %108 = arith.mulf %103, %107 : vector<2x8xf32>
    %109 = vector.shape_cast %108 : vector<2x8xf32> to vector<2x8x1xf32>
    %110 = vector.broadcast %109 : vector<2x8x1xf32> to vector<2x8x32xf32>
    %111 = arith.mulf %110, %0 : vector<2x8x32xf32>
    %cst_38 = arith.constant dense<0.000000e+00> : vector<2x32xf32>
    %112 = vector.multi_reduction <add>, %111, %cst_38 [1] : vector<2x8x32xf32> to vector<2x32xf32>
    %113 = arith.truncf %112 : vector<2x32xf32> to vector<2x32xbf16>
    %cst_39 = arith.constant dense<0.000000e+00> : vector<2x96xf32>
    %114 = tpu.matmul %113, %3, %cst_39 {dimension_numbers = #tpu.dot_dimension_numbers<[1], [0], [0], [1], [0, 0, 1, 1], [], []>} : vector<2x32xbf16>, vector<32x96xbf16>, vector<2x96xf32> -> vector<2x96xf32>
    %115 = arith.addf %86, %114 : vector<2x96xf32>
    %116 = vector.broadcast %4 : vector<1x96xf32> to vector<2x96xf32>
    %117 = arith.addf %115, %116 : vector<2x96xf32>
    %118 = vector.extract_strided_slice %117 {offsets = [0, 0], sizes = [2, 64], strides = [1, 1]} : vector<2x96xf32> to vector<2x64xf32>
    %119 = vector.extract_strided_slice %92 {offsets = [0, 0], sizes = [2, 64], strides = [1, 1]} : vector<2x96xf32> to vector<2x64xf32>
    %120 = arith.addf %118, %119 : vector<2x64xf32>
    %121 = arith.negf %120 : vector<2x64xf32>
    %122 = math.exp %121 : vector<2x64xf32>
    %cst_40 = arith.constant 1.000000e+00 : f32
    %123 = vector.broadcast %cst_40 : f32 to vector<2x64xf32>
    %124 = arith.addf %123, %122 : vector<2x64xf32>
    %125 = arith.divf %123, %124 : vector<2x64xf32>
    %126 = vector.extract_strided_slice %125 {offsets = [0, 0], sizes = [2, 32], strides = [1, 1]} : vector<2x64xf32> to vector<2x32xf32>
    %127 = vector.extract_strided_slice %125 {offsets = [0, 32], sizes = [2, 32], strides = [1, 1]} : vector<2x64xf32> to vector<2x32xf32>
    %128 = vector.extract_strided_slice %117 {offsets = [0, 64], sizes = [2, 32], strides = [1, 1]} : vector<2x96xf32> to vector<2x32xf32>
    %129 = vector.extract_strided_slice %92 {offsets = [0, 64], sizes = [2, 32], strides = [1, 1]} : vector<2x96xf32> to vector<2x32xf32>
    %130 = arith.mulf %126, %129 : vector<2x32xf32>
    %131 = arith.addf %128, %130 : vector<2x32xf32>
    %132 = math.tanh %131 : vector<2x32xf32>
    %cst_41 = arith.constant 1.000000e+00 : f32
    %133 = vector.broadcast %cst_41 : f32 to vector<2x32xf32>
    %134 = arith.subf %133, %127 : vector<2x32xf32>
    %135 = arith.mulf %134, %132 : vector<2x32xf32>
    %136 = arith.mulf %127, %68 : vector<2x32xf32>
    %137 = arith.addf %135, %136 : vector<2x32xf32>
    %138 = arith.truncf %137 : vector<2x32xf32> to vector<2x32xbf16>
    %cst_42 = arith.constant dense<0.000000e+00> : vector<2x128xf32>
    %139 = tpu.matmul %138, %6, %cst_42 {dimension_numbers = #tpu.dot_dimension_numbers<[1], [0], [0], [1], [0, 0, 1, 1], [], []>} : vector<2x32xbf16>, vector<32x128xbf16>, vector<2x128xf32> -> vector<2x128xf32>
    %140 = vector.broadcast %7 : vector<1x128xf32> to vector<2x128xf32>
    %141 = arith.addf %139, %140 : vector<2x128xf32>
    %cst_43 = arith.constant dense<0xFF800000> : vector<2xf32>
    %142 = vector.multi_reduction <maximumf>, %141, %cst_43 [1] : vector<2x128xf32> to vector<2xf32>
    %143 = vector.shape_cast %142 : vector<2xf32> to vector<2x1xf32>
    %144 = vector.broadcast %143 : vector<2x1xf32> to vector<2x128xf32>
    %145 = arith.cmpf oeq, %141, %144 : vector<2x128xf32>
    %c128_i32_44 = arith.constant 128 : i32
    %146 = vector.broadcast %c128_i32_44 : i32 to vector<2x128xi32>
    %147 = arith.select %145, %13, %146 : vector<2x128xi1>, vector<2x128xi32>
    %cst_45 = arith.constant dense<2147483647> : vector<2xi32>
    %148 = vector.multi_reduction <minsi>, %147, %cst_45 [1] : vector<2x128xi32> to vector<2xi32>
    %149 = vector.shape_cast %148 : vector<2xi32> to vector<2x1xi32>
    %150 = vector.broadcast %149 : vector<2x1xi32> to vector<2x32xi32>
    %151 = arith.cmpi eq, %14, %150 : vector<2x32xi32>
    %152 = arith.extui %151 : vector<2x32xi1> to vector<2x32xi32>
    %153 = arith.sitofp %152 : vector<2x32xi32> to vector<2x32xf32>
    %154 = arith.truncf %153 : vector<2x32xf32> to vector<2x32xbf16>
    %cst_46 = arith.constant dense<0.000000e+00> : vector<2x96xf32>
    %155 = tpu.matmul %154, %8, %cst_46 {dimension_numbers = #tpu.dot_dimension_numbers<[1], [0], [0], [1], [0, 0, 1, 1], [], []>} : vector<2x32xbf16>, vector<32x96xbf16>, vector<2x96xf32> -> vector<2x96xf32>
    %156 = arith.truncf %137 : vector<2x32xf32> to vector<2x32xbf16>
    %cst_47 = arith.constant dense<0.000000e+00> : vector<2x128xf32>
    %157 = tpu.matmul %156, %2, %cst_47 {dimension_numbers = #tpu.dot_dimension_numbers<[1], [0], [0], [1], [0, 0, 1, 1], [], []>} : vector<2x32xbf16>, vector<32x128xbf16>, vector<2x128xf32> -> vector<2x128xf32>
    %158 = vector.extract_strided_slice %157 {offsets = [0, 0], sizes = [2, 32], strides = [1, 1]} : vector<2x128xf32> to vector<2x32xf32>
    %159 = vector.extract_strided_slice %157 {offsets = [0, 32], sizes = [2, 96], strides = [1, 1]} : vector<2x128xf32> to vector<2x96xf32>
    %160 = vector.broadcast %5 : vector<1x96xf32> to vector<2x96xf32>
    %161 = arith.addf %159, %160 : vector<2x96xf32>
    %162 = vector.shape_cast %158 : vector<2x32xf32> to vector<2x1x32xf32>
    %163 = vector.broadcast %162 : vector<2x1x32xf32> to vector<2x8x32xf32>
    %164 = arith.addf %163, %1 : vector<2x8x32xf32>
    %165 = math.tanh %164 : vector<2x8x32xf32>
    %166 = arith.mulf %165, %12 : vector<2x8x32xf32>
    %cst_48 = arith.constant dense<0.000000e+00> : vector<2x8xf32>
    %167 = vector.multi_reduction <add>, %166, %cst_48 [2] : vector<2x8x32xf32> to vector<2x8xf32>
    %cst_49 = arith.constant dense<0xFF800000> : vector<2xf32>
    %168 = vector.multi_reduction <maximumf>, %167, %cst_49 [1] : vector<2x8xf32> to vector<2xf32>
    %169 = vector.shape_cast %168 : vector<2xf32> to vector<2x1xf32>
    %170 = vector.broadcast %169 : vector<2x1xf32> to vector<2x8xf32>
    %171 = arith.subf %167, %170 : vector<2x8xf32>
    %172 = math.exp %171 : vector<2x8xf32>
    %cst_50 = arith.constant dense<0.000000e+00> : vector<2xf32>
    %173 = vector.multi_reduction <add>, %172, %cst_50 [1] : vector<2x8xf32> to vector<2xf32>
    %174 = vector.shape_cast %173 : vector<2xf32> to vector<2x1xf32>
    %175 = tpu.reciprocal %174 {approx = true} : vector<2x1xf32> -> vector<2x1xf32>
    %176 = vector.broadcast %175 : vector<2x1xf32> to vector<2x8xf32>
    %177 = arith.mulf %172, %176 : vector<2x8xf32>
    %178 = vector.shape_cast %177 : vector<2x8xf32> to vector<2x8x1xf32>
    %179 = vector.broadcast %178 : vector<2x8x1xf32> to vector<2x8x32xf32>
    %180 = arith.mulf %179, %0 : vector<2x8x32xf32>
    %cst_51 = arith.constant dense<0.000000e+00> : vector<2x32xf32>
    %181 = vector.multi_reduction <add>, %180, %cst_51 [1] : vector<2x8x32xf32> to vector<2x32xf32>
    %182 = arith.truncf %181 : vector<2x32xf32> to vector<2x32xbf16>
    %cst_52 = arith.constant dense<0.000000e+00> : vector<2x96xf32>
    %183 = tpu.matmul %182, %3, %cst_52 {dimension_numbers = #tpu.dot_dimension_numbers<[1], [0], [0], [1], [0, 0, 1, 1], [], []>} : vector<2x32xbf16>, vector<32x96xbf16>, vector<2x96xf32> -> vector<2x96xf32>
    %184 = arith.addf %155, %183 : vector<2x96xf32>
    %185 = vector.broadcast %4 : vector<1x96xf32> to vector<2x96xf32>
    %186 = arith.addf %184, %185 : vector<2x96xf32>
    %187 = vector.extract_strided_slice %186 {offsets = [0, 0], sizes = [2, 64], strides = [1, 1]} : vector<2x96xf32> to vector<2x64xf32>
    %188 = vector.extract_strided_slice %161 {offsets = [0, 0], sizes = [2, 64], strides = [1, 1]} : vector<2x96xf32> to vector<2x64xf32>
    %189 = arith.addf %187, %188 : vector<2x64xf32>
    %190 = arith.negf %189 : vector<2x64xf32>
    %191 = math.exp %190 : vector<2x64xf32>
    %cst_53 = arith.constant 1.000000e+00 : f32
    %192 = vector.broadcast %cst_53 : f32 to vector<2x64xf32>
    %193 = arith.addf %192, %191 : vector<2x64xf32>
    %194 = arith.divf %192, %193 : vector<2x64xf32>
    %195 = vector.extract_strided_slice %194 {offsets = [0, 0], sizes = [2, 32], strides = [1, 1]} : vector<2x64xf32> to vector<2x32xf32>
    %196 = vector.extract_strided_slice %194 {offsets = [0, 32], sizes = [2, 32], strides = [1, 1]} : vector<2x64xf32> to vector<2x32xf32>
    %197 = vector.extract_strided_slice %186 {offsets = [0, 64], sizes = [2, 32], strides = [1, 1]} : vector<2x96xf32> to vector<2x32xf32>
    %198 = vector.extract_strided_slice %161 {offsets = [0, 64], sizes = [2, 32], strides = [1, 1]} : vector<2x96xf32> to vector<2x32xf32>
    %199 = arith.mulf %195, %198 : vector<2x32xf32>
    %200 = arith.addf %197, %199 : vector<2x32xf32>
    %201 = math.tanh %200 : vector<2x32xf32>
    %cst_54 = arith.constant 1.000000e+00 : f32
    %202 = vector.broadcast %cst_54 : f32 to vector<2x32xf32>
    %203 = arith.subf %202, %196 : vector<2x32xf32>
    %204 = arith.mulf %203, %201 : vector<2x32xf32>
    %205 = arith.mulf %196, %137 : vector<2x32xf32>
    %206 = arith.addf %204, %205 : vector<2x32xf32>
    %207 = arith.truncf %206 : vector<2x32xf32> to vector<2x32xbf16>
    %cst_55 = arith.constant dense<0.000000e+00> : vector<2x128xf32>
    %208 = tpu.matmul %207, %6, %cst_55 {dimension_numbers = #tpu.dot_dimension_numbers<[1], [0], [0], [1], [0, 0, 1, 1], [], []>} : vector<2x32xbf16>, vector<32x128xbf16>, vector<2x128xf32> -> vector<2x128xf32>
    %209 = vector.broadcast %7 : vector<1x128xf32> to vector<2x128xf32>
    %210 = arith.addf %208, %209 : vector<2x128xf32>
    %cst_56 = arith.constant dense<0xFF800000> : vector<2xf32>
    %211 = vector.multi_reduction <maximumf>, %210, %cst_56 [1] : vector<2x128xf32> to vector<2xf32>
    %212 = vector.shape_cast %211 : vector<2xf32> to vector<2x1xf32>
    %213 = vector.broadcast %212 : vector<2x1xf32> to vector<2x128xf32>
    %214 = arith.cmpf oeq, %210, %213 : vector<2x128xf32>
    %c128_i32_57 = arith.constant 128 : i32
    %215 = vector.broadcast %c128_i32_57 : i32 to vector<2x128xi32>
    %216 = arith.select %214, %13, %215 : vector<2x128xi1>, vector<2x128xi32>
    %cst_58 = arith.constant dense<2147483647> : vector<2xi32>
    %217 = vector.multi_reduction <minsi>, %216, %cst_58 [1] : vector<2x128xi32> to vector<2xi32>
    %218 = vector.shape_cast %217 : vector<2xi32> to vector<2x1xi32>
    %219 = vector.broadcast %218 : vector<2x1xi32> to vector<2x32xi32>
    %220 = arith.cmpi eq, %14, %219 : vector<2x32xi32>
    %221 = arith.extui %220 : vector<2x32xi1> to vector<2x32xi32>
    %222 = arith.sitofp %221 : vector<2x32xi32> to vector<2x32xf32>
    %223 = arith.truncf %222 : vector<2x32xf32> to vector<2x32xbf16>
    %cst_59 = arith.constant dense<0.000000e+00> : vector<2x96xf32>
    %224 = tpu.matmul %223, %8, %cst_59 {dimension_numbers = #tpu.dot_dimension_numbers<[1], [0], [0], [1], [0, 0, 1, 1], [], []>} : vector<2x32xbf16>, vector<32x96xbf16>, vector<2x96xf32> -> vector<2x96xf32>
    %225 = arith.truncf %206 : vector<2x32xf32> to vector<2x32xbf16>
    %cst_60 = arith.constant dense<0.000000e+00> : vector<2x128xf32>
    %226 = tpu.matmul %225, %2, %cst_60 {dimension_numbers = #tpu.dot_dimension_numbers<[1], [0], [0], [1], [0, 0, 1, 1], [], []>} : vector<2x32xbf16>, vector<32x128xbf16>, vector<2x128xf32> -> vector<2x128xf32>
    %227 = vector.extract_strided_slice %226 {offsets = [0, 0], sizes = [2, 32], strides = [1, 1]} : vector<2x128xf32> to vector<2x32xf32>
    %228 = vector.extract_strided_slice %226 {offsets = [0, 32], sizes = [2, 96], strides = [1, 1]} : vector<2x128xf32> to vector<2x96xf32>
    %229 = vector.broadcast %5 : vector<1x96xf32> to vector<2x96xf32>
    %230 = arith.addf %228, %229 : vector<2x96xf32>
    %231 = vector.shape_cast %227 : vector<2x32xf32> to vector<2x1x32xf32>
    %232 = vector.broadcast %231 : vector<2x1x32xf32> to vector<2x8x32xf32>
    %233 = arith.addf %232, %1 : vector<2x8x32xf32>
    %234 = math.tanh %233 : vector<2x8x32xf32>
    %235 = arith.mulf %234, %12 : vector<2x8x32xf32>
    %cst_61 = arith.constant dense<0.000000e+00> : vector<2x8xf32>
    %236 = vector.multi_reduction <add>, %235, %cst_61 [2] : vector<2x8x32xf32> to vector<2x8xf32>
    %cst_62 = arith.constant dense<0xFF800000> : vector<2xf32>
    %237 = vector.multi_reduction <maximumf>, %236, %cst_62 [1] : vector<2x8xf32> to vector<2xf32>
    %238 = vector.shape_cast %237 : vector<2xf32> to vector<2x1xf32>
    %239 = vector.broadcast %238 : vector<2x1xf32> to vector<2x8xf32>
    %240 = arith.subf %236, %239 : vector<2x8xf32>
    %241 = math.exp %240 : vector<2x8xf32>
    %cst_63 = arith.constant dense<0.000000e+00> : vector<2xf32>
    %242 = vector.multi_reduction <add>, %241, %cst_63 [1] : vector<2x8xf32> to vector<2xf32>
    %243 = vector.shape_cast %242 : vector<2xf32> to vector<2x1xf32>
    %244 = tpu.reciprocal %243 {approx = true} : vector<2x1xf32> -> vector<2x1xf32>
    %245 = vector.broadcast %244 : vector<2x1xf32> to vector<2x8xf32>
    %246 = arith.mulf %241, %245 : vector<2x8xf32>
    %247 = vector.shape_cast %246 : vector<2x8xf32> to vector<2x8x1xf32>
    %248 = vector.broadcast %247 : vector<2x8x1xf32> to vector<2x8x32xf32>
    %249 = arith.mulf %248, %0 : vector<2x8x32xf32>
    %cst_64 = arith.constant dense<0.000000e+00> : vector<2x32xf32>
    %250 = vector.multi_reduction <add>, %249, %cst_64 [1] : vector<2x8x32xf32> to vector<2x32xf32>
    %251 = arith.truncf %250 : vector<2x32xf32> to vector<2x32xbf16>
    %cst_65 = arith.constant dense<0.000000e+00> : vector<2x96xf32>
    %252 = tpu.matmul %251, %3, %cst_65 {dimension_numbers = #tpu.dot_dimension_numbers<[1], [0], [0], [1], [0, 0, 1, 1], [], []>} : vector<2x32xbf16>, vector<32x96xbf16>, vector<2x96xf32> -> vector<2x96xf32>
    %253 = arith.addf %224, %252 : vector<2x96xf32>
    %254 = vector.broadcast %4 : vector<1x96xf32> to vector<2x96xf32>
    %255 = arith.addf %253, %254 : vector<2x96xf32>
    %256 = vector.extract_strided_slice %255 {offsets = [0, 0], sizes = [2, 64], strides = [1, 1]} : vector<2x96xf32> to vector<2x64xf32>
    %257 = vector.extract_strided_slice %230 {offsets = [0, 0], sizes = [2, 64], strides = [1, 1]} : vector<2x96xf32> to vector<2x64xf32>
    %258 = arith.addf %256, %257 : vector<2x64xf32>
    %259 = arith.negf %258 : vector<2x64xf32>
    %260 = math.exp %259 : vector<2x64xf32>
    %cst_66 = arith.constant 1.000000e+00 : f32
    %261 = vector.broadcast %cst_66 : f32 to vector<2x64xf32>
    %262 = arith.addf %261, %260 : vector<2x64xf32>
    %263 = arith.divf %261, %262 : vector<2x64xf32>
    %264 = vector.extract_strided_slice %263 {offsets = [0, 0], sizes = [2, 32], strides = [1, 1]} : vector<2x64xf32> to vector<2x32xf32>
    %265 = vector.extract_strided_slice %263 {offsets = [0, 32], sizes = [2, 32], strides = [1, 1]} : vector<2x64xf32> to vector<2x32xf32>
    %266 = vector.extract_strided_slice %255 {offsets = [0, 64], sizes = [2, 32], strides = [1, 1]} : vector<2x96xf32> to vector<2x32xf32>
    %267 = vector.extract_strided_slice %230 {offsets = [0, 64], sizes = [2, 32], strides = [1, 1]} : vector<2x96xf32> to vector<2x32xf32>
    %268 = arith.mulf %264, %267 : vector<2x32xf32>
    %269 = arith.addf %266, %268 : vector<2x32xf32>
    %270 = math.tanh %269 : vector<2x32xf32>
    %cst_67 = arith.constant 1.000000e+00 : f32
    %271 = vector.broadcast %cst_67 : f32 to vector<2x32xf32>
    %272 = arith.subf %271, %265 : vector<2x32xf32>
    %273 = arith.mulf %272, %270 : vector<2x32xf32>
    %274 = arith.mulf %265, %206 : vector<2x32xf32>
    %275 = arith.addf %273, %274 : vector<2x32xf32>
    %276 = arith.truncf %275 : vector<2x32xf32> to vector<2x32xbf16>
    %cst_68 = arith.constant dense<0.000000e+00> : vector<2x128xf32>
    %277 = tpu.matmul %276, %6, %cst_68 {dimension_numbers = #tpu.dot_dimension_numbers<[1], [0], [0], [1], [0, 0, 1, 1], [], []>} : vector<2x32xbf16>, vector<32x128xbf16>, vector<2x128xf32> -> vector<2x128xf32>
    %278 = vector.broadcast %7 : vector<1x128xf32> to vector<2x128xf32>
    %279 = arith.addf %277, %278 : vector<2x128xf32>
    %280 = tpu.concatenate %72, %141, %210, %279 in 0 : vector<2x128xf32>, vector<2x128xf32>, vector<2x128xf32>, vector<2x128xf32> -> vector<8x128xf32>
    %c0_69 = arith.constant 0 : index
    %c0_70 = arith.constant 0 : index
    %281 = vector.load %arg12[%c0_69, %c0_70] : memref<8x128xf32, #tpu.memory_space<vmem>>, vector<8x128xf32>
    tpu.vector_store %arg12[%c0_69, %c0_70], %280 {strides = array<i32>} : memref<8x128xf32, #tpu.memory_space<vmem>>, vector<8x128xf32>,
    return
  }
  func.func @transform_0(%arg0: i32) -> (i32, i32, i32) {
    %c0_i32 = arith.constant 0 : i32
    %c0_i32_0 = arith.constant 0 : i32
    %c0_i32_1 = arith.constant 0 : i32
    %c0_i32_2 = arith.constant 0 : i32
    return %c0_i32, %c0_i32_0, %c0_i32_1 : i32, i32, i32
  }
  func.func @transform_1(%arg0: i32) -> (i32, i32, i32) {
    %c0_i32 = arith.constant 0 : i32
    %c0_i32_0 = arith.constant 0 : i32
    %c0_i32_1 = arith.constant 0 : i32
    %c0_i32_2 = arith.constant 0 : i32
    return %c0_i32, %c0_i32_0, %c0_i32_1 : i32, i32, i32
  }
  func.func @transform_2(%arg0: i32) -> (i32, i32) {
    %c0_i32 = arith.constant 0 : i32
    %c0_i32_0 = arith.constant 0 : i32
    %c0_i32_1 = arith.constant 0 : i32
    return %c0_i32, %c0_i32_0 : i32, i32
  }
  func.func @transform_3(%arg0: i32) -> (i32, i32) {
    %c0_i32 = arith.constant 0 : i32
    %c0_i32_0 = arith.constant 0 : i32
    %c0_i32_1 = arith.constant 0 : i32
    return %c0_i32, %c0_i32_0 : i32, i32
  }
  func.func @transform_4(%arg0: i32) -> (i32, i32) {
    %c0_i32 = arith.constant 0 : i32
    %c0_i32_0 = arith.constant 0 : i32
    %c0_i32_1 = arith.constant 0 : i32
    return %c0_i32, %c0_i32_0 : i32, i32
  }
  func.func @transform_5(%arg0: i32) -> (i32, i32) {
    %c0_i32 = arith.constant 0 : i32
    %c0_i32_0 = arith.constant 0 : i32
    %c0_i32_1 = arith.constant 0 : i32
    return %c0_i32, %c0_i32_0 : i32, i32
  }
  func.func @transform_6(%arg0: i32) -> (i32, i32) {
    %c0_i32 = arith.constant 0 : i32
    %c0_i32_0 = arith.constant 0 : i32
    %c0_i32_1 = arith.constant 0 : i32
    return %c0_i32, %c0_i32_0 : i32, i32
  }
  func.func @transform_7(%arg0: i32) -> (i32, i32) {
    %c0_i32 = arith.constant 0 : i32
    %c0_i32_0 = arith.constant 0 : i32
    %c0_i32_1 = arith.constant 0 : i32
    return %c0_i32, %c0_i32_0 : i32, i32
  }
  func.func @transform_8(%arg0: i32) -> (i32, i32) {
    %c0_i32 = arith.constant 0 : i32
    %c0_i32_0 = arith.constant 0 : i32
    %c0_i32_1 = arith.constant 0 : i32
    return %c0_i32, %c0_i32_0 : i32, i32
  }
  func.func @transform_9(%arg0: i32) -> (i32, i32) {
    %c0_i32 = arith.constant 0 : i32
    %c0_i32_0 = arith.constant 0 : i32
    %c0_i32_1 = arith.constant 0 : i32
    return %c0_i32, %c0_i32_0 : i32, i32
  }
  func.func @transform_10(%arg0: i32) -> (i32, i32) {
    %c0_i32 = arith.constant 0 : i32
    %c0_i32_0 = arith.constant 0 : i32
    %c0_i32_1 = arith.constant 0 : i32
    return %c0_i32, %c0_i32_0 : i32, i32
  }
  func.func @transform_11(%arg0: i32) -> (i32, i32) {
    %c0_i32 = arith.constant 0 : i32
    %c0_i32_0 = arith.constant 0 : i32
    %c0_i32_1 = arith.constant 0 : i32
    return %c0_i32, %c0_i32_0 : i32, i32
  }
}

</mosaic_0001>

<llo_original>
// kernel: tpu_custom_call.1
$region0: #{tpu_custom_call.1}
  #allocation0 [shape = 'u32[]', space=smem, size = 0x4, offset = 0x4, fixed_abs, tag = 'smem constant byte address 0x4 - core index']
  #allocation1 [shape = 'u32[72,128]{1,0:T(1,128)}', space=vmem, size = 0x9000, scoped, tag = 'internal scratch']
  %s0 = inlined_call_operand.hbm [shape: f32[2,8,32], index: 0, kind: input, shape index: {}]
  %s1 = inlined_call_operand.hbm [shape: f32[2,8,32], index: 1, kind: input, shape index: {}]
  %s2 = inlined_call_operand.hbm [shape: f32[2,96], index: 2, kind: input, shape index: {}]
  %s3 = inlined_call_operand.hbm [shape: bf16[32,128], index: 3, kind: input, shape index: {}]
  %s4 = inlined_call_operand.vmem [shape: f32[1,32], index: 4, kind: input, shape index: {}]
  %s5 = inlined_call_operand.hbm [shape: bf16[32,96], index: 5, kind: input, shape index: {}]
  %s6 = inlined_call_operand.vmem [shape: f32[1,96], index: 6, kind: input, shape index: {}]
  %s7 = inlined_call_operand.vmem [shape: f32[1,96], index: 7, kind: input, shape index: {}]
  %s8 = inlined_call_operand.hbm [shape: bf16[32,128], index: 8, kind: input, shape index: {}]
  %s9 = inlined_call_operand.vmem [shape: f32[1,128], index: 9, kind: input, shape index: {}]
  %s10 = inlined_call_operand.hbm [shape: bf16[32,96], index: 10, kind: input, shape index: {}]
  %s11 = inlined_call_operand.hbm [shape: f32[8,128], index: 11, kind: output, shape index: {}]
  %s12 = sld [smem:[#allocation0]]
  $region82: #{tpu_custom_call.1} parent=0
    _
  %s14 = ssub.s32 1, %s12
  %s15 = scalar_select 0, %s14, %s12
  $region1: #{tpu_custom_call.1} parent=0
    #allocation2 [shape = 'u8[8192]{0}', space=vmem, size = 0x2000, scoped, tag = 'input window, operand 0, single buffered']
    #allocation3 [shape = 's32[1]{0}', space=sflag, size = 0x4, scoped, tag = 'scoped memory for tpu_custom_call.1']
    #allocation4 [shape = 's32[1]{0}', space=sflag, size = 0x4, scoped, tag = 'scoped memory for tpu_custom_call.1']
    #allocation5 [shape = 'u8[8192]{0}', space=vmem, size = 0x2000, scoped, tag = 'input window, operand 1, single buffered']
    #allocation6 [shape = 's32[1]{0}', space=sflag, size = 0x4, scoped, tag = 'scoped memory for tpu_custom_call.1']
    #allocation7 [shape = 'u8[1024]{0}', space=vmem, size = 0x400, scoped, tag = 'input window, operand 2, single buffered']
    #allocation8 [shape = 'u8[8192]{0}', space=vmem, size = 0x2000, scoped, tag = 'input window, operand 3, single buffered']
    #allocation9 [shape = 's32[1]{0}', space=sflag, size = 0x4, scoped, tag = 'scoped memory for tpu_custom_call.1']
    #allocation10 [shape = 'u8[8192]{0}', space=vmem, size = 0x2000, scoped, tag = 'input window, operand 5, single buffered']
    #allocation11 [shape = 'u8[8192]{0}', space=vmem, size = 0x2000, scoped, tag = 'input window, operand 8, single buffered']
    #allocation12 [shape = 's32[1]{0}', space=sflag, size = 0x4, scoped, tag = 'scoped memory for tpu_custom_call.1']
    #allocation13 [shape = 'u8[8192]{0}', space=vmem, size = 0x2000, scoped, tag = 'input window, operand 10, single buffered']
    #allocation14 [shape = 'u8[4096]{0}', space=vmem, size = 0x1000, scoped, tag = 'output window, operand 0, single buffered']
    %16 = vsyncpa [#allocation3], 0
    %17 = vsyncpa [#allocation6], 0
    %18 = vsyncpa [#allocation9], 0
    %19 = vsyncpa [#allocation12], 0
    %20 = vsyncpa [#allocation4], 0
    // Predicated region
    $region2: #{tpu_custom_call.1} parent=1 // pred_check
      _
    $region3: #{tpu_custom_call.1} parent=1 // pred_check_branch
      %22 = sbr.rel (0) target = $region5
    $region4: #{tpu_custom_call.1} parent=1 // pred_region
      %24 = vsyncadd [#allocation3], 0
      %s25 = sshll.u32 %s0, 4
      %s26 = int_to_ptr.hbm [resolvable:$true] %s25
      %s27 = sshll.u32 [#allocation2], 4
      %s28 = int_to_ptr.vmem [resolvable:$true] %s27
      %33 = dma.hbm_to_vmem [thread:$0]  %s26, 256, %s28, [#allocation3], 128, 128, 8
    $region5: #{tpu_custom_call.1} parent=1 // pred_fallthru
      _
    // Predicated region
    $region6: #{tpu_custom_call.1} parent=1 // pred_check
      _
    $region7: #{tpu_custom_call.1} parent=1 // pred_check_branch
      %35 = sbr.rel (0) target = $region9
    $region8: #{tpu_custom_call.1} parent=1 // pred_region
      %37 = vsyncadd [#allocation6], 0
      %s38 = sshll.u32 %s1, 4
      %s39 = int_to_ptr.hbm [resolvable:$true] %s38
      %s40 = sshll.u32 [#allocation5], 4
      %s41 = int_to_ptr.vmem [resolvable:$true] %s40
      %46 = dma.hbm_to_vmem [thread:$0]  %s39, 256, %s41, [#allocation6], 128, 128, 8
    $region9: #{tpu_custom_call.1} parent=1 // pred_fallthru
      _
    // Predicated region
    $region10: #{tpu_custom_call.1} parent=1 // pred_check
      _
    $region11: #{tpu_custom_call.1} parent=1 // pred_check_branch
      %48 = sbr.rel (0) target = $region13
    $region12: #{tpu_custom_call.1} parent=1 // pred_region
      %50 = vsyncadd [#allocation6], 0
      %s52 = sshll.u32 %s2, 4
      %s53 = int_to_ptr.hbm [resolvable:$true] %s52
      %s54 = sshll.u32 [#allocation7], 4
      %s55 = int_to_ptr.vmem [resolvable:$true] %s54
      %57 = dma.hbm_to_vmem [thread:$0]  %s53, 32, %s55, [#allocation6]
    $region13: #{tpu_custom_call.1} parent=1 // pred_fallthru
      _
    // Predicated region
    $region14: #{tpu_custom_call.1} parent=1 // pred_check
      _
    $region15: #{tpu_custom_call.1} parent=1 // pred_check_branch
      %59 = sbr.rel (0) target = $region17
    $region16: #{tpu_custom_call.1} parent=1 // pred_region
      %61 = vsyncadd [#allocation9], 0
      %s62 = sshll.u32 %s3, 4
      %s63 = int_to_ptr.hbm [resolvable:$true] %s62
      %s64 = sshll.u32 [#allocation8], 4
      %s65 = int_to_ptr.vmem [resolvable:$true] %s64
      %70 = dma.hbm_to_vmem [thread:$0]  %s63, 256, %s65, [#allocation9], 64, 64, 4
    $region17: #{tpu_custom_call.1} parent=1 // pred_fallthru
      _
    // Predicated region
    $region18: #{tpu_custom_call.1} parent=1 // pred_check
      _
    $region19: #{tpu_custom_call.1} parent=1 // pred_check_branch
      %72 = sbr.rel (0) target = $region21
    $region20: #{tpu_custom_call.1} parent=1 // pred_region
      _
    $region21: #{tpu_custom_call.1} parent=1 // pred_fallthru
      _
    // Predicated region
    $region22: #{tpu_custom_call.1} parent=1 // pred_check
      _
    $region23: #{tpu_custom_call.1} parent=1 // pred_check_branch
      %74 = sbr.rel (0) target = $region25
    $region24: #{tpu_custom_call.1} parent=1 // pred_region
      %76 = vsyncadd [#allocation9], 0
      %s77 = sshll.u32 %s5, 4
      %s78 = int_to_ptr.hbm [resolvable:$true] %s77
      %s79 = sshll.u32 [#allocation10], 4
      %s80 = int_to_ptr.vmem [resolvable:$true] %s79
      %85 = dma.hbm_to_vmem [thread:$0]  %s78, 256, %s80, [#allocation9], 64, 64, 4
    $region25: #{tpu_custom_call.1} parent=1 // pred_fallthru
      _
    // Predicated region
    $region26: #{tpu_custom_call.1} parent=1 // pred_check
      _
    $region27: #{tpu_custom_call.1} parent=1 // pred_check_branch
      %87 = sbr.rel (0) target = $region29
    $region28: #{tpu_custom_call.1} parent=1 // pred_region
      _
    $region29: #{tpu_custom_call.1} parent=1 // pred_fallthru
      _
    // Predicated region
    $region30: #{tpu_custom_call.1} parent=1 // pred_check
      _
    $region31: #{tpu_custom_call.1} parent=1 // pred_check_branch
      %89 = sbr.rel (0) target = $region33
    $region32: #{tpu_custom_call.1} parent=1 // pred_region
      _
    $region33: #{tpu_custom_call.1} parent=1 // pred_fallthru
      _
    // Predicated region
    $region34: #{tpu_custom_call.1} parent=1 // pred_check
      _
    $region35: #{tpu_custom_call.1} parent=1 // pred_check_branch
      %91 = sbr.rel (0) target = $region37
    $region36: #{tpu_custom_call.1} parent=1 // pred_region
      %93 = vsyncadd [#allocation12], 0
      %s94 = sshll.u32 %s8, 4
      %s95 = int_to_ptr.hbm [resolvable:$true] %s94
      %s96 = sshll.u32 [#allocation11], 4
      %s97 = int_to_ptr.vmem [resolvable:$true] %s96
      %102 = dma.hbm_to_vmem [thread:$0]  %s95, 256, %s97, [#allocation12], 64, 64, 4
    $region37: #{tpu_custom_call.1} parent=1 // pred_fallthru
      _
    // Predicated region
    $region38: #{tpu_custom_call.1} parent=1 // pred_check
      _
    $region39: #{tpu_custom_call.1} parent=1 // pred_check_branch
      %104 = sbr.rel (0) target = $region41
    $region40: #{tpu_custom_call.1} parent=1 // pred_region
      _
    $region41: #{tpu_custom_call.1} parent=1 // pred_fallthru
      _
    // Predicated region
    $region42: #{tpu_custom_call.1} parent=1 // pred_check
      _
    $region43: #{tpu_custom_call.1} parent=1 // pred_check_branch
      %106 = sbr.rel (0) target = $region45
    $region44: #{tpu_custom_call.1} parent=1 // pred_region
      %108 = vsyncadd [#allocation12], 0
      %s109 = sshll.u32 %s10, 4
      %s110 = int_to_ptr.hbm [resolvable:$true] %s109
      %s111 = sshll.u32 [#allocation13], 4
      %s112 = int_to_ptr.vmem [resolvable:$true] %s111
      %117 = dma.hbm_to_vmem [thread:$0]  %s110, 256, %s112, [#allocation12], 64, 64, 4
    $region45: #{tpu_custom_call.1} parent=1 // pred_fallthru
      _
    // Predicated region
    $region46: #{tpu_custom_call.1} parent=1 // pred_check
      _
    $region47: #{tpu_custom_call.1} parent=1 // pred_check_branch
      %119 = sbr.rel (0) target = $region49
    $region48: #{tpu_custom_call.1} parent=1 // pred_region
      %121 = dma.done [#allocation3], 256
    $region49: #{tpu_custom_call.1} parent=1 // pred_fallthru
      _
    // Predicated region
    $region50: #{tpu_custom_call.1} parent=1 // pred_check
      _
    $region51: #{tpu_custom_call.1} parent=1 // pred_check_branch
      %123 = sbr.rel (0) target = $region53
    $region52: #{tpu_custom_call.1} parent=1 // pred_region
      %125 = dma.done [#allocation6], 256
    $region53: #{tpu_custom_call.1} parent=1 // pred_fallthru
      _
    // Predicated region
    $region54: #{tpu_custom_call.1} parent=1 // pred_check
      _
    $region55: #{tpu_custom_call.1} parent=1 // pred_check_branch
      %127 = sbr.rel (0) target = $region57
    $region56: #{tpu_custom_call.1} parent=1 // pred_region
      %129 = dma.done [#allocation6], 32
    $region57: #{tpu_custom_call.1} parent=1 // pred_fallthru
      _
    // Predicated region
    $region58: #{tpu_custom_call.1} parent=1 // pred_check
      _
    $region59: #{tpu_custom_call.1} parent=1 // pred_check_branch
      %131 = sbr.rel (0) target = $region61
    $region60: #{tpu_custom_call.1} parent=1 // pred_region
      %133 = dma.done [#allocation9], 256
    $region61: #{tpu_custom_call.1} parent=1 // pred_fallthru
      _
    // Predicated region
    $region62: #{tpu_custom_call.1} parent=1 // pred_check
      _
    $region63: #{tpu_custom_call.1} parent=1 // pred_check_branch
      %135 = sbr.rel (0) target = $region65
    $region64: #{tpu_custom_call.1} parent=1 // pred_region
      %137 = dma.done [#allocation9], 256
    $region65: #{tpu_custom_call.1} parent=1 // pred_fallthru
      _
    // Predicated region
    $region66: #{tpu_custom_call.1} parent=1 // pred_check
      _
    $region67: #{tpu_custom_call.1} parent=1 // pred_check_branch
      %139 = sbr.rel (0) target = $region69
    $region68: #{tpu_custom_call.1} parent=1 // pred_region
      %141 = dma.done [#allocation12], 256
    $region69: #{tpu_custom_call.1} parent=1 // pred_fallthru
      _
    // Predicated region
    $region70: #{tpu_custom_call.1} parent=1 // pred_check
      _
    $region71: #{tpu_custom_call.1} parent=1 // pred_check_branch
      %143 = sbr.rel (0) target = $region73
    $region72: #{tpu_custom_call.1} parent=1 // pred_region
      %145 = dma.done [#allocation12], 256
    $region73: #{tpu_custom_call.1} parent=1 // pred_fallthru
      _
    %v147 = vld [vmem:[#allocation2] sm:$0xff]
    %v148 = vld [vmem:[#allocation2 + $0x8] sm:$0xff]
    %v149 = vld [vmem:[#allocation5] sm:$0xff]
    %v150 = vld [vmem:[#allocation5 + $0x8] sm:$0xff]
    %v151 = vld [vmem:[#allocation8] sm:$0xf]
    %v152 = vld [vmem:[#allocation8 + $0x4] sm:$0xf]
    %v153 = vld [vmem:[#allocation8 + $0x8] sm:$0xf]
    %v154 = vld [vmem:[#allocation8 + $0xc] sm:$0xf]
    %v155 = vld [vmem:[#allocation10] sm:$0xf]
    %v156 = vld [vmem:[#allocation10 + $0x4] sm:$0xf]
    %v157 = vld [vmem:[#allocation10 + $0x8] sm:$0xf]
    %v158 = vld [vmem:[#allocation10 + $0xc] sm:$0xf]
    %v159 = vld [vmem:[%s6] sm:$0x1]
    %v160 = vld [vmem:[%s7] sm:$0x1]
    %v161 = vld [vmem:[#allocation11] sm:$0xf]
    %v162 = vld [vmem:[#allocation11 + $0x4] sm:$0xf]
    %v163 = vld [vmem:[#allocation11 + $0x8] sm:$0xf]
    %v164 = vld [vmem:[#allocation11 + $0xc] sm:$0xf]
    %v165 = vld [vmem:[%s9] sm:$0x1]
    %v166 = vld [vmem:[#allocation13] sm:$0xf]
    %v167 = vld [vmem:[#allocation13 + $0x4] sm:$0xf]
    %v168 = vld [vmem:[#allocation13 + $0x8] sm:$0xf]
    %v169 = vld [vmem:[#allocation13 + $0xc] sm:$0xf]
    %v170 = vld [vmem:[%s4] sm:$0x1]
    %v172 = vperm.slane %v170, 0
    %v174 = vlaneseq
    %v175 = vand.u32 %v174, 127
    %v176 = vld [vmem:[#allocation7] sm:$0x3]
    %v177 = vpack.c.bf16 %v147, %v147
    %v178 = vpack.c.bf16 %v148, %v148
    %v181 = vunpack.c.l.b16 %v177
    %v182 = vunpack.c.l.b16 %v178
    %v183 = vrot.slane %v181, 7
    %v184 = vrot.slane %v182, 6
    %vm185 = vcmask 1041409
    %v186 = vsel %vm185, %v184, %v183
    %v187 = vpack.c.b16 %v186, %v186
    %v192 = vunpack.c.l.b16 %v151
    %v193 = vunpack.c.l.b16 %v152
    %v194 = vunpack.c.l.b16 %v153
    %v195 = vunpack.c.l.b16 %v154
    %v196 = vpack.c.b16 %v193, %v192
    %v197 = vpack.c.b16 %v195, %v194
    %vm200 = vcmask 261120
    %v202 = vsel %vm200, %v187, 0
    %204 = vmatpush.bf16.msra.mxu0 0
    %205 = vmatpush.bf16.msra.mxu0 0
    %206 = vmatpush.bf16.msra.mxu0 0
    %207 = vmatpush.bf16.msra.mxu0 0
    %208 = vmatpush.bf16.msra.mxu0 0
    %209 = vmatpush.bf16.msra.mxu0 0
    %210 = vmatpush.bf16.msra.mxu0 %v197
    %211 = vmatpush.bf16.msra.mxu0 %v196
    %212 = vmatmul.bf16.gmra.mxu0 %v202
    %v213 = vpop.f32.mrf.mxu0
    %v214 = vadd.f32 0.0, %v213
    %v215 = vpop.f32.mrf.mxu0
    %216 = vdwg.mxu0
    %v218 = vperm.slane %v160, 0
    %219 = vrot.lane.b32.xlu0 %v218, 32
    %v220 = vpop.permute.xlu0 %219
    %v222 = vadd.f32 %v214, %v220
    %v224 = vrot.slane %v214, 1
    %v225 = vperm.slane %v214, 0
    %v226 = vperm.slane %v224, 0
    %v229 = vadd.f32 %v225, %v149
    %v230 = vadd.f32 %v226, %v150
    %v231 = vtanh.pop %v229
    %v232 = vtanh.pop %v230
    %v233 = vmul.f32 %v231, %v172
    %v234 = vmul.f32 %v232, %v172
    %v235 = vsel %vm200, %v233, 0.0
    %236 = vadd.xlane.f32.xlu0 %v235
    %v237 = vpop.xlane.xlu0 %236
    %v238 = vsel %vm200, %v234, 0.0
    %239 = vadd.xlane.f32.xlu0 %v238
    %v240 = vpop.xlane.xlu0 %239
    %v243 = vperm.slane %v237, %v175
    %v244 = vperm.slane %v240, %v175
    %v245 = vsel %vm185, %v244, %v243
    %vm247 = vcmask 58368
    %v248 = vsel %vm247, %v245, -inf
    %249 = vmax.xlane.f32.xlu0 %v248
    %v250 = vpop.xlane.xlu0 %249
    %v252 = vperm.slane %v250, 0
    %v253 = vperm.slane %v250, 1
    %v256 = vsub.f32 %v237, %v252
    %v257 = vsub.f32 %v240, %v253
    %v258 = vmul.f32 %v256, 1.442695
    %v259 = vpow.pop %v258
    %v260 = vmul.f32 %v257, 1.442695
    %v261 = vpow.pop %v260
    %264 = vset.pattern.permute.xlu0 0
    %265 = vperm.xlu0 %264, %v259
    %v266 = vpop.permute.xlu0 %265
    %267 = vset.pattern.permute.xlu0 0
    %268 = vperm.xlu0 %267, %v261
    %v269 = vpop.permute.xlu0 %268
    %v270 = vperm.slane %v266, %v175
    %v271 = vperm.slane %v269, %v175
    %v272 = vsel %vm185, %v271, %v270
    %v274 = vsel %vm247, %v272, 0.0
    %275 = vadd.xlane.f32.xlu0 %v274
    %v276 = vpop.xlane.xlu0 %275
    %v277 = vrcp.pop %v276
    %v279 = vperm.slane %v277, 0
    %v280 = vperm.slane %v277, 1
    %v283 = vmul.f32 %v259, %v279
    %v284 = vmul.f32 %v261, %v280
    %286 = vset.pattern.permute.xlu0 0
    %287 = vperm.xlu0 %286, %v283
    %v288 = vpop.permute.xlu0 %287
    %291 = vset.pattern.permute.xlu0 0
    %292 = vperm.xlu0 %291, %v284
    %v293 = vpop.permute.xlu0 %292
    %v295 = vmul.f32 %v288, %v147
    %v296 = vmul.f32 %v293, %v148
    %v297 = vsel %vm200, %v295, 0.0
    %v298 = vrot.slane %v297, 4
    %v299 = vadd.f32 %v297, %v298
    %v300 = vrot.slane %v299, 2
    %v301 = vadd.f32 %v299, %v300
    %v302 = vrot.slane %v301, 1
    %v303 = vadd.f32 %v301, %v302
    %v304 = vsel %vm200, %v296, 0.0
    %v305 = vrot.slane %v304, 4
    %v306 = vadd.f32 %v304, %v305
    %v307 = vrot.slane %v306, 2
    %v308 = vadd.f32 %v306, %v307
    %v309 = vrot.slane %v308, 1
    %v310 = vadd.f32 %v308, %v309
    %v311 = vpack.c.bf16 %v303, %v303
    %v312 = vpack.c.bf16 %v310, %v310
    %v315 = vunpack.c.l.b16 %v311
    %v316 = vunpack.c.l.b16 %v312
    %v317 = vsel %vm185, %v316, %v315
    %v318 = vpack.c.b16 %v317, %v317
    %v323 = vunpack.c.l.b16 %v155
    %v324 = vunpack.c.l.b16 %v156
    %v325 = vunpack.c.l.b16 %v157
    %v326 = vunpack.c.l.b16 %v158
    %v327 = vpack.c.b16 %v324, %v323
    %v328 = vpack.c.b16 %v326, %v325
    %v332 = vsel %vm200, %v318, 0
    %334 = vmatpush.bf16.msra.mxu0 0
    %335 = vmatpush.bf16.msra.mxu0 0
    %336 = vmatpush.bf16.msra.mxu0 0
    %337 = vmatpush.bf16.msra.mxu0 0
    %338 = vmatpush.bf16.msra.mxu0 0
    %339 = vmatpush.bf16.msra.mxu0 0
    %340 = vmatpush.bf16.msra.mxu0 %v328
    %341 = vmatpush.bf16.msra.mxu0 %v327
    %342 = vmatmul.bf16.gmra.mxu0 %v332
    %v343 = vpop.f32.mrf.mxu0
    %v344 = vadd.f32 0.0, %v343
    %v345 = vpop.f32.mrf.mxu0
    %346 = vdwg.mxu0
    %v347 = vadd.f32 %v176, %v344
    %v349 = vperm.slane %v159, 0
    %v351 = vadd.f32 %v347, %v349
    %353 = vrot.lane.b32.xlu0 %v222, 96
    %v354 = vpop.permute.xlu0 %353
    %v356 = vadd.f32 %v351, %v354
    %v357 = vxor.u32 %v356, 2147483648
    %v358 = vmul.f32 %v357, 1.442695
    %v359 = vpow.pop %v358
    %v360 = vadd.f32 %v359, 1.0
    %v361 = vrcp.pop %v360
    %v362 = vmul.f32 %v360, %v361
    %v363 = vsub.f32 1.0, %v362
    %v364 = vmul.f32 %v361, %v363
    %v365 = vadd.f32 %v361, %v364
    %vm366 = vweird.f32 %v360
    %vm367 = vweird.f32 %v361
    %vm368 = vmor %vm366, %vm367
    %v369 = vsel %vm368, %v361, %v365
    %v370 = vand.u32 2147483647, %v360
    %vm371 = vcmp.eq.f32.partialorder %v370, 8.507059e+37
    %v372 = vand.u32 %v360, 2147483648
    %v373 = vor.u32 1.1754944e-38, %v372
    %v374 = vsel %vm371, %v373, %v369
    %v375 = vmul.f32 1.0, %v374
    %376 = vrot.lane.b32.xlu0 %v222, 32
    %v377 = vpop.permute.xlu0 %376
    %v379 = vmul.f32 %v375, %v377
    %381 = vrot.lane.b32.xlu0 %v379, 64
    %v382 = vpop.permute.xlu0 %381
    %v384 = vadd.f32 %v351, %v382
    %v385 = vtanh.pop %v384
    %v386 = vsub.f32 1.0, %v375
    %388 = vrot.lane.b32.xlu0 %v385, 96
    %v389 = vpop.permute.xlu0 %388
    %v391 = vmul.f32 %v386, %v389
    %v394 = vrot.slane %v147, 7
    %v395 = vrot.slane %v148, 6
    %v396 = vsel %vm185, %v395, %v394
    %397 = vrot.lane.b32.xlu0 %v396, 32
    %v398 = vpop.permute.xlu0 %397
    %v400 = vmul.f32 %v375, %v398
    %v401 = vadd.f32 %v391, %v400
    %v402 = vpack.c.bf16 %v401, %v401
    %v404 = vperm.slane %v165, 0
    %407 = vrot.lane.b32.xlu0 %v402, 96
    %v408 = vpop.permute.xlu0 %407
    %v413 = vunpack.c.l.b16 %v161
    %v414 = vunpack.c.l.b16 %v162
    %v415 = vunpack.c.l.b16 %v163
    %v416 = vunpack.c.l.b16 %v164
    %v417 = vpack.c.b16 %v414, %v413
    %v418 = vpack.c.b16 %v416, %v415
    %v422 = vsel %vm200, %v408, 0
    %424 = vmatpush.bf16.msra.mxu0 0
    %425 = vmatpush.bf16.msra.mxu0 0
    %426 = vmatpush.bf16.msra.mxu0 0
    %427 = vmatpush.bf16.msra.mxu0 0
    %428 = vmatpush.bf16.msra.mxu0 0
    %429 = vmatpush.bf16.msra.mxu0 0
    %430 = vmatpush.bf16.msra.mxu0 %v418
    %431 = vmatpush.bf16.msra.mxu0 %v417
    %432 = vmatmul.bf16.gmra.mxu0 %v422
    %v433 = vpop.f32.mrf.mxu0
    %v434 = vadd.f32 %v404, %v433
    %v435 = vpop.f32.mrf.mxu0
    %436 = vdwg.mxu0
    %vm437 = vcmask 1041408
    %v438 = vsel %vm437, %v434, -inf
    %439 = vmax.xlane.f32.xlu0 %v438
    %v440 = vpop.xlane.xlu0 %439
    %vm441 = vcmp.eq.f32.partialorder %v434, %v440
    %v442 = vsel %vm441, %v175, 128
    %v443 = vsel %vm437, %v442, 2147483647
    %v444 = vand.u32 %v443, 65535
    %v445 = vshra.s32 %v443, 16
    %v446 = vcvt.s32.f32 %v444
    %v447 = vcvt.s32.f32 %v445
    %448 = vmin.xlane.f32.xlu0 %v447
    %v449 = vpop.xlane.xlu0 %448
    %vm450 = vcmp.eq.f32.partialorder %v447, %v449
    %v451 = vsel %vm450, %v446, inf
    %452 = vmin.xlane.f32.xlu0 %v451
    %v453 = vpop.xlane.xlu0 %452
    %v454 = vcvt.f32.s32 %v453
    %v455 = vcvt.f32.s32 %v449
    %v456 = vshll.u32 %v455, 16
    %v457 = vadd.s32 %v456, %v454
    %vm458 = vcmp.eq.s32.totalorder %v175, %v457
    %v459 = vsel %vm458, 1, 0
    %v460 = vcvt.s32.f32 %v459
    %v461 = vpack.c.bf16 %v460, %v460
    %462 = vmatpush.bf16.msra.mxu0 0
    %463 = vmatpush.bf16.msra.mxu0 0
    %464 = vmatpush.bf16.msra.mxu0 0
    %465 = vmatpush.bf16.msra.mxu0 0
    %466 = vmatpush.bf16.msra.mxu0 0
    %467 = vmatpush.bf16.msra.mxu0 0
    %468 = vmatpush.bf16.msra.mxu0 %v197
    %469 = vmatpush.bf16.msra.mxu0 %v196
    %470 = vmatmul.bf16.gmra.mxu0 %v422
    %v471 = vpop.f32.mrf.mxu0
    %v472 = vadd.f32 0.0, %v471
    %v473 = vpop.f32.mrf.mxu0
    %474 = vdwg.mxu0
    %v475 = vadd.f32 %v472, %v220
    %v477 = vrot.slane %v472, 1
    %v478 = vperm.slane %v472, 0
    %v479 = vperm.slane %v477, 0
    %v482 = vadd.f32 %v478, %v149
    %v483 = vadd.f32 %v479, %v150
    %v484 = vtanh.pop %v482
    %v485 = vtanh.pop %v483
    %v486 = vmul.f32 %v484, %v172
    %v487 = vmul.f32 %v485, %v172
    %v488 = vsel %vm200, %v486, 0.0
    %489 = vadd.xlane.f32.xlu0 %v488
    %v490 = vpop.xlane.xlu0 %489
    %v491 = vsel %vm200, %v487, 0.0
    %492 = vadd.xlane.f32.xlu0 %v491
    %v493 = vpop.xlane.xlu0 %492
    %v496 = vperm.slane %v490, %v175
    %v497 = vperm.slane %v493, %v175
    %v498 = vsel %vm185, %v497, %v496
    %v500 = vsel %vm247, %v498, -inf
    %501 = vmax.xlane.f32.xlu0 %v500
    %v502 = vpop.xlane.xlu0 %501
    %v504 = vperm.slane %v502, 0
    %v505 = vperm.slane %v502, 1
    %v508 = vsub.f32 %v490, %v504
    %v509 = vsub.f32 %v493, %v505
    %v510 = vmul.f32 %v508, 1.442695
    %v511 = vpow.pop %v510
    %v512 = vmul.f32 %v509, 1.442695
    %v513 = vpow.pop %v512
    %516 = vset.pattern.permute.xlu0 0
    %517 = vperm.xlu0 %516, %v511
    %v518 = vpop.permute.xlu0 %517
    %519 = vset.pattern.permute.xlu0 0
    %520 = vperm.xlu0 %519, %v513
    %v521 = vpop.permute.xlu0 %520
    %v522 = vperm.slane %v518, %v175
    %v523 = vperm.slane %v521, %v175
    %v524 = vsel %vm185, %v523, %v522
    %v526 = vsel %vm247, %v524, 0.0
    %527 = vadd.xlane.f32.xlu0 %v526
    %v528 = vpop.xlane.xlu0 %527
    %v529 = vrcp.pop %v528
    %v531 = vperm.slane %v529, 0
    %v532 = vperm.slane %v529, 1
    %v535 = vmul.f32 %v511, %v531
    %v536 = vmul.f32 %v513, %v532
    %538 = vset.pattern.permute.xlu0 0
    %539 = vperm.xlu0 %538, %v535
    %v540 = vpop.permute.xlu0 %539
    %543 = vset.pattern.permute.xlu0 0
    %544 = vperm.xlu0 %543, %v536
    %v545 = vpop.permute.xlu0 %544
    %v547 = vmul.f32 %v540, %v147
    %v548 = vmul.f32 %v545, %v148
    %v549 = vsel %vm200, %v547, 0.0
    %v550 = vrot.slane %v549, 4
    %v551 = vadd.f32 %v549, %v550
    %v552 = vrot.slane %v551, 2
    %v553 = vadd.f32 %v551, %v552
    %v554 = vrot.slane %v553, 1
    %v555 = vadd.f32 %v553, %v554
    %v556 = vsel %vm200, %v548, 0.0
    %v557 = vrot.slane %v556, 4
    %v558 = vadd.f32 %v556, %v557
    %v559 = vrot.slane %v558, 2
    %v560 = vadd.f32 %v558, %v559
    %v561 = vrot.slane %v560, 1
    %v562 = vadd.f32 %v560, %v561
    %v563 = vpack.c.bf16 %v555, %v555
    %v564 = vpack.c.bf16 %v562, %v562
    %v567 = vunpack.c.l.b16 %v563
    %v568 = vunpack.c.l.b16 %v564
    %v569 = vsel %vm185, %v568, %v567
    %v570 = vpack.c.b16 %v569, %v569
    %v572 = vsel %vm200, %v570, 0
    %574 = vmatpush.bf16.msra.mxu0 0
    %575 = vmatpush.bf16.msra.mxu0 0
    %576 = vmatpush.bf16.msra.mxu0 0
    %577 = vmatpush.bf16.msra.mxu0 0
    %578 = vmatpush.bf16.msra.mxu0 0
    %579 = vmatpush.bf16.msra.mxu0 0
    %580 = vmatpush.bf16.msra.mxu0 %v328
    %581 = vmatpush.bf16.msra.mxu0 %v327
    %582 = vmatmul.bf16.gmra.mxu0 %v572
    %v583 = vpop.f32.mrf.mxu0
    %v584 = vadd.f32 0.0, %v583
    %v585 = vpop.f32.mrf.mxu0
    %586 = vdwg.mxu0
    %v591 = vunpack.c.l.b16 %v166
    %v592 = vunpack.c.l.b16 %v167
    %v593 = vunpack.c.l.b16 %v168
    %v594 = vunpack.c.l.b16 %v169
    %v595 = vpack.c.b16 %v592, %v591
    %v596 = vpack.c.b16 %v594, %v593
    %v600 = vsel %vm200, %v461, 0
    %602 = vmatpush.bf16.msra.mxu0 0
    %603 = vmatpush.bf16.msra.mxu0 0
    %604 = vmatpush.bf16.msra.mxu0 0
    %605 = vmatpush.bf16.msra.mxu0 0
    %606 = vmatpush.bf16.msra.mxu0 0
    %607 = vmatpush.bf16.msra.mxu0 0
    %608 = vmatpush.bf16.msra.mxu0 %v596
    %609 = vmatpush.bf16.msra.mxu0 %v595
    %610 = vmatmul.bf16.gmra.mxu0 %v600
    %v611 = vpop.f32.mrf.mxu0
    %v612 = vadd.f32 %v584, %v611
    %v613 = vpop.f32.mrf.mxu0
    %614 = vdwg.mxu0
    %v615 = vadd.f32 %v612, %v349
    %617 = vrot.lane.b32.xlu0 %v475, 96
    %v618 = vpop.permute.xlu0 %617
    %v620 = vadd.f32 %v615, %v618
    %v621 = vxor.u32 %v620, 2147483648
    %v622 = vmul.f32 %v621, 1.442695
    %v623 = vpow.pop %v622
    %v624 = vadd.f32 %v623, 1.0
    %v625 = vrcp.pop %v624
    %v626 = vmul.f32 %v624, %v625
    %v627 = vsub.f32 1.0, %v626
    %v628 = vmul.f32 %v625, %v627
    %v629 = vadd.f32 %v625, %v628
    %vm630 = vweird.f32 %v624
    %vm631 = vweird.f32 %v625
    %vm632 = vmor %vm630, %vm631
    %v633 = vsel %vm632, %v625, %v629
    %v634 = vand.u32 2147483647, %v624
    %vm635 = vcmp.eq.f32.partialorder %v634, 8.507059e+37
    %v636 = vand.u32 %v624, 2147483648
    %v637 = vor.u32 1.1754944e-38, %v636
    %v638 = vsel %vm635, %v637, %v633
    %v639 = vmul.f32 1.0, %v638
    %640 = vrot.lane.b32.xlu0 %v475, 32
    %v641 = vpop.permute.xlu0 %640
    %v643 = vmul.f32 %v639, %v641
    %645 = vrot.lane.b32.xlu0 %v643, 64
    %v646 = vpop.permute.xlu0 %645
    %v648 = vadd.f32 %v615, %v646
    %v649 = vtanh.pop %v648
    %v650 = vsub.f32 1.0, %v639
    %652 = vrot.lane.b32.xlu0 %v649, 96
    %v653 = vpop.permute.xlu0 %652
    %v655 = vmul.f32 %v650, %v653
    %v656 = vmul.f32 %v639, %v401
    %v657 = vadd.f32 %v655, %v656
    %v658 = vpack.c.bf16 %v657, %v657
    %660 = vrot.lane.b32.xlu0 %v658, 96
    %v661 = vpop.permute.xlu0 %660
    %v663 = vsel %vm200, %v661, 0
    %665 = vmatpush.bf16.msra.mxu0 0
    %666 = vmatpush.bf16.msra.mxu0 0
    %667 = vmatpush.bf16.msra.mxu0 0
    %668 = vmatpush.bf16.msra.mxu0 0
    %669 = vmatpush.bf16.msra.mxu0 0
    %670 = vmatpush.bf16.msra.mxu0 0
    %671 = vmatpush.bf16.msra.mxu0 %v418
    %672 = vmatpush.bf16.msra.mxu0 %v417
    %673 = vmatmul.bf16.gmra.mxu0 %v663
    %v674 = vpop.f32.mrf.mxu0
    %v675 = vadd.f32 %v404, %v674
    %v676 = vpop.f32.mrf.mxu0
    %677 = vdwg.mxu0
    %v678 = vsel %vm437, %v675, -inf
    %679 = vmax.xlane.f32.xlu0 %v678
    %v680 = vpop.xlane.xlu0 %679
    %vm681 = vcmp.eq.f32.partialorder %v675, %v680
    %v682 = vsel %vm681, %v175, 128
    %v683 = vsel %vm437, %v682, 2147483647
    %v684 = vand.u32 %v683, 65535
    %v685 = vshra.s32 %v683, 16
    %v686 = vcvt.s32.f32 %v684
    %v687 = vcvt.s32.f32 %v685
    %688 = vmin.xlane.f32.xlu0 %v687
    %v689 = vpop.xlane.xlu0 %688
    %vm690 = vcmp.eq.f32.partialorder %v687, %v689
    %v691 = vsel %vm690, %v686, inf
    %692 = vmin.xlane.f32.xlu0 %v691
    %v693 = vpop.xlane.xlu0 %692
    %v694 = vcvt.f32.s32 %v693
    %v695 = vcvt.f32.s32 %v689
    %v696 = vshll.u32 %v695, 16
    %v697 = vadd.s32 %v696, %v694
    %vm698 = vcmp.eq.s32.totalorder %v175, %v697
    %v699 = vsel %vm698, 1, 0
    %v700 = vcvt.s32.f32 %v699
    %v701 = vpack.c.bf16 %v700, %v700
    %702 = vmatpush.bf16.msra.mxu0 0
    %703 = vmatpush.bf16.msra.mxu0 0
    %704 = vmatpush.bf16.msra.mxu0 0
    %705 = vmatpush.bf16.msra.mxu0 0
    %706 = vmatpush.bf16.msra.mxu0 0
    %707 = vmatpush.bf16.msra.mxu0 0
    %708 = vmatpush.bf16.msra.mxu0 %v197
    %709 = vmatpush.bf16.msra.mxu0 %v196
    %710 = vmatmul.bf16.gmra.mxu0 %v663
    %v711 = vpop.f32.mrf.mxu0
    %v712 = vadd.f32 0.0, %v711
    %v713 = vpop.f32.mrf.mxu0
    %714 = vdwg.mxu0
    %v715 = vadd.f32 %v712, %v220
    %v717 = vrot.slane %v712, 1
    %v718 = vperm.slane %v712, 0
    %v719 = vperm.slane %v717, 0
    %v722 = vadd.f32 %v718, %v149
    %v723 = vadd.f32 %v719, %v150
    %v724 = vtanh.pop %v722
    %v725 = vtanh.pop %v723
    %v726 = vmul.f32 %v724, %v172
    %v727 = vmul.f32 %v725, %v172
    %v728 = vsel %vm200, %v726, 0.0
    %729 = vadd.xlane.f32.xlu0 %v728
    %v730 = vpop.xlane.xlu0 %729
    %v731 = vsel %vm200, %v727, 0.0
    %732 = vadd.xlane.f32.xlu0 %v731
    %v733 = vpop.xlane.xlu0 %732
    %v736 = vperm.slane %v730, %v175
    %v737 = vperm.slane %v733, %v175
    %v738 = vsel %vm185, %v737, %v736
    %v740 = vsel %vm247, %v738, -inf
    %741 = vmax.xlane.f32.xlu0 %v740
    %v742 = vpop.xlane.xlu0 %741
    %v744 = vperm.slane %v742, 0
    %v745 = vperm.slane %v742, 1
    %v748 = vsub.f32 %v730, %v744
    %v749 = vsub.f32 %v733, %v745
    %v750 = vmul.f32 %v748, 1.442695
    %v751 = vpow.pop %v750
    %v752 = vmul.f32 %v749, 1.442695
    %v753 = vpow.pop %v752
    %756 = vset.pattern.permute.xlu0 0
    %757 = vperm.xlu0 %756, %v751
    %v758 = vpop.permute.xlu0 %757
    %759 = vset.pattern.permute.xlu0 0
    %760 = vperm.xlu0 %759, %v753
    %v761 = vpop.permute.xlu0 %760
    %v762 = vperm.slane %v758, %v175
    %v763 = vperm.slane %v761, %v175
    %v764 = vsel %vm185, %v763, %v762
    %v766 = vsel %vm247, %v764, 0.0
    %767 = vadd.xlane.f32.xlu0 %v766
    %v768 = vpop.xlane.xlu0 %767
    %v769 = vrcp.pop %v768
    %v771 = vperm.slane %v769, 0
    %v772 = vperm.slane %v769, 1
    %v775 = vmul.f32 %v751, %v771
    %v776 = vmul.f32 %v753, %v772
    %778 = vset.pattern.permute.xlu0 0
    %779 = vperm.xlu0 %778, %v775
    %v780 = vpop.permute.xlu0 %779
    %783 = vset.pattern.permute.xlu0 0
    %784 = vperm.xlu0 %783, %v776
    %v785 = vpop.permute.xlu0 %784
    %v787 = vmul.f32 %v780, %v147
    %v788 = vmul.f32 %v785, %v148
    %v789 = vsel %vm200, %v787, 0.0
    %v790 = vrot.slane %v789, 4
    %v791 = vadd.f32 %v789, %v790
    %v792 = vrot.slane %v791, 2
    %v793 = vadd.f32 %v791, %v792
    %v794 = vrot.slane %v793, 1
    %v795 = vadd.f32 %v793, %v794
    %v796 = vsel %vm200, %v788, 0.0
    %v797 = vrot.slane %v796, 4
    %v798 = vadd.f32 %v796, %v797
    %v799 = vrot.slane %v798, 2
    %v800 = vadd.f32 %v798, %v799
    %v801 = vrot.slane %v800, 1
    %v802 = vadd.f32 %v800, %v801
    %v803 = vpack.c.bf16 %v795, %v795
    %v804 = vpack.c.bf16 %v802, %v802
    %v807 = vunpack.c.l.b16 %v803
    %v808 = vunpack.c.l.b16 %v804
    %v809 = vsel %vm185, %v808, %v807
    %v810 = vpack.c.b16 %v809, %v809
    %v812 = vsel %vm200, %v810, 0
    %814 = vmatpush.bf16.msra.mxu0 0
    %815 = vmatpush.bf16.msra.mxu0 0
    %816 = vmatpush.bf16.msra.mxu0 0
    %817 = vmatpush.bf16.msra.mxu0 0
    %818 = vmatpush.bf16.msra.mxu0 0
    %819 = vmatpush.bf16.msra.mxu0 0
    %820 = vmatpush.bf16.msra.mxu0 %v328
    %821 = vmatpush.bf16.msra.mxu0 %v327
    %822 = vmatmul.bf16.gmra.mxu0 %v812
    %v823 = vpop.f32.mrf.mxu0
    %v824 = vadd.f32 0.0, %v823
    %v825 = vpop.f32.mrf.mxu0
    %826 = vdwg.mxu0
    %v828 = vsel %vm200, %v701, 0
    %830 = vmatpush.bf16.msra.mxu0 0
    %831 = vmatpush.bf16.msra.mxu0 0
    %832 = vmatpush.bf16.msra.mxu0 0
    %833 = vmatpush.bf16.msra.mxu0 0
    %834 = vmatpush.bf16.msra.mxu0 0
    %835 = vmatpush.bf16.msra.mxu0 0
    %836 = vmatpush.bf16.msra.mxu0 %v596
    %837 = vmatpush.bf16.msra.mxu0 %v595
    %838 = vmatmul.bf16.gmra.mxu0 %v828
    %v839 = vpop.f32.mrf.mxu0
    %v840 = vadd.f32 %v824, %v839
    %v841 = vpop.f32.mrf.mxu0
    %842 = vdwg.mxu0
    %v843 = vadd.f32 %v840, %v349
    %845 = vrot.lane.b32.xlu0 %v715, 96
    %v846 = vpop.permute.xlu0 %845
    %v848 = vadd.f32 %v843, %v846
    %v849 = vxor.u32 %v848, 2147483648
    %v850 = vmul.f32 %v849, 1.442695
    %v851 = vpow.pop %v850
    %v852 = vadd.f32 %v851, 1.0
    %v853 = vrcp.pop %v852
    %v854 = vmul.f32 %v852, %v853
    %v855 = vsub.f32 1.0, %v854
    %v856 = vmul.f32 %v853, %v855
    %v857 = vadd.f32 %v853, %v856
    %vm858 = vweird.f32 %v852
    %vm859 = vweird.f32 %v853
    %vm860 = vmor %vm858, %vm859
    %v861 = vsel %vm860, %v853, %v857
    %v862 = vand.u32 2147483647, %v852
    %vm863 = vcmp.eq.f32.partialorder %v862, 8.507059e+37
    %v864 = vand.u32 %v852, 2147483648
    %v865 = vor.u32 1.1754944e-38, %v864
    %v866 = vsel %vm863, %v865, %v861
    %v867 = vmul.f32 1.0, %v866
    %868 = vrot.lane.b32.xlu0 %v715, 32
    %v869 = vpop.permute.xlu0 %868
    %v871 = vmul.f32 %v867, %v869
    %873 = vrot.lane.b32.xlu0 %v871, 64
    %v874 = vpop.permute.xlu0 %873
    %v876 = vadd.f32 %v843, %v874
    %v877 = vtanh.pop %v876
    %v878 = vsub.f32 1.0, %v867
    %880 = vrot.lane.b32.xlu0 %v877, 96
    %v881 = vpop.permute.xlu0 %880
    %v883 = vmul.f32 %v878, %v881
    %v884 = vmul.f32 %v867, %v657
    %v885 = vadd.f32 %v883, %v884
    %v886 = vpack.c.bf16 %v885, %v885
    %888 = vrot.lane.b32.xlu0 %v886, 96
    %v889 = vpop.permute.xlu0 %888
    %v891 = vsel %vm200, %v889, 0
    %893 = vmatpush.bf16.msra.mxu0 0
    %894 = vmatpush.bf16.msra.mxu0 0
    %895 = vmatpush.bf16.msra.mxu0 0
    %896 = vmatpush.bf16.msra.mxu0 0
    %897 = vmatpush.bf16.msra.mxu0 0
    %898 = vmatpush.bf16.msra.mxu0 0
    %899 = vmatpush.bf16.msra.mxu0 %v418
    %900 = vmatpush.bf16.msra.mxu0 %v417
    %901 = vmatmul.bf16.gmra.mxu0 %v891
    %v902 = vpop.f32.mrf.mxu0
    %v903 = vadd.f32 %v404, %v902
    %v904 = vpop.f32.mrf.mxu0
    %905 = vdwg.mxu0
    %v906 = vsel %vm437, %v903, -inf
    %907 = vmax.xlane.f32.xlu0 %v906
    %v908 = vpop.xlane.xlu0 %907
    %vm909 = vcmp.eq.f32.partialorder %v903, %v908
    %v910 = vsel %vm909, %v175, 128
    %v911 = vsel %vm437, %v910, 2147483647
    %v912 = vand.u32 %v911, 65535
    %v913 = vshra.s32 %v911, 16
    %v914 = vcvt.s32.f32 %v912
    %v915 = vcvt.s32.f32 %v913
    %916 = vmin.xlane.f32.xlu0 %v915
    %v917 = vpop.xlane.xlu0 %916
    %vm918 = vcmp.eq.f32.partialorder %v915, %v917
    %v919 = vsel %vm918, %v914, inf
    %920 = vmin.xlane.f32.xlu0 %v919
    %v921 = vpop.xlane.xlu0 %920
    %v922 = vcvt.f32.s32 %v921
    %v923 = vcvt.f32.s32 %v917
    %v924 = vshll.u32 %v923, 16
    %v925 = vadd.s32 %v924, %v922
    %vm926 = vcmp.eq.s32.totalorder %v175, %v925
    %v927 = vsel %vm926, 1, 0
    %v928 = vcvt.s32.f32 %v927
    %v929 = vpack.c.bf16 %v928, %v928
    %930 = vmatpush.bf16.msra.mxu0 0
    %931 = vmatpush.bf16.msra.mxu0 0
    %932 = vmatpush.bf16.msra.mxu0 0
    %933 = vmatpush.bf16.msra.mxu0 0
    %934 = vmatpush.bf16.msra.mxu0 0
    %935 = vmatpush.bf16.msra.mxu0 0
    %936 = vmatpush.bf16.msra.mxu0 %v197
    %937 = vmatpush.bf16.msra.mxu0 %v196
    %938 = vmatmul.bf16.gmra.mxu0 %v891
    %v939 = vpop.f32.mrf.mxu0
    %v940 = vadd.f32 0.0, %v939
    %v941 = vpop.f32.mrf.mxu0
    %942 = vdwg.mxu0
    %v943 = vadd.f32 %v940, %v220
    %v945 = vrot.slane %v940, 1
    %v946 = vperm.slane %v940, 0
    %v947 = vperm.slane %v945, 0
    %v950 = vadd.f32 %v946, %v149
    %v951 = vadd.f32 %v947, %v150
    %v952 = vtanh.pop %v950
    %v953 = vtanh.pop %v951
    %v954 = vmul.f32 %v952, %v172
    %v955 = vmul.f32 %v953, %v172
    %v956 = vsel %vm200, %v954, 0.0
    %957 = vadd.xlane.f32.xlu0 %v956
    %v958 = vpop.xlane.xlu0 %957
    %v959 = vsel %vm200, %v955, 0.0
    %960 = vadd.xlane.f32.xlu0 %v959
    %v961 = vpop.xlane.xlu0 %960
    %v964 = vperm.slane %v958, %v175
    %v965 = vperm.slane %v961, %v175
    %v966 = vsel %vm185, %v965, %v964
    %v968 = vsel %vm247, %v966, -inf
    %969 = vmax.xlane.f32.xlu0 %v968
    %v970 = vpop.xlane.xlu0 %969
    %v972 = vperm.slane %v970, 0
    %v973 = vperm.slane %v970, 1
    %v976 = vsub.f32 %v958, %v972
    %v977 = vsub.f32 %v961, %v973
    %v978 = vmul.f32 %v976, 1.442695
    %v979 = vpow.pop %v978
    %v980 = vmul.f32 %v977, 1.442695
    %v981 = vpow.pop %v980
    %984 = vset.pattern.permute.xlu0 0
    %985 = vperm.xlu0 %984, %v979
    %v986 = vpop.permute.xlu0 %985
    %987 = vset.pattern.permute.xlu0 0
    %988 = vperm.xlu0 %987, %v981
    %v989 = vpop.permute.xlu0 %988
    %v990 = vperm.slane %v986, %v175
    %v991 = vperm.slane %v989, %v175
    %v992 = vsel %vm185, %v991, %v990
    %v994 = vsel %vm247, %v992, 0.0
    %995 = vadd.xlane.f32.xlu0 %v994
    %v996 = vpop.xlane.xlu0 %995
    %v997 = vrcp.pop %v996
    %v999 = vperm.slane %v997, 0
    %v1000 = vperm.slane %v997, 1
    %v1003 = vmul.f32 %v979, %v999
    %v1004 = vmul.f32 %v981, %v1000
    %1006 = vset.pattern.permute.xlu0 0
    %1007 = vperm.xlu0 %1006, %v1003
    %v1008 = vpop.permute.xlu0 %1007
    %1011 = vset.pattern.permute.xlu0 0
    %1012 = vperm.xlu0 %1011, %v1004
    %v1013 = vpop.permute.xlu0 %1012
    %v1015 = vmul.f32 %v1008, %v147
    %v1016 = vmul.f32 %v1013, %v148
    %v1017 = vsel %vm200, %v1015, 0.0
    %v1018 = vrot.slane %v1017, 4
    %v1019 = vadd.f32 %v1017, %v1018
    %v1020 = vrot.slane %v1019, 2
    %v1021 = vadd.f32 %v1019, %v1020
    %v1022 = vrot.slane %v1021, 1
    %v1023 = vadd.f32 %v1021, %v1022
    %v1024 = vsel %vm200, %v1016, 0.0
    %v1025 = vrot.slane %v1024, 4
    %v1026 = vadd.f32 %v1024, %v1025
    %v1027 = vrot.slane %v1026, 2
    %v1028 = vadd.f32 %v1026, %v1027
    %v1029 = vrot.slane %v1028, 1
    %v1030 = vadd.f32 %v1028, %v1029
    %v1031 = vpack.c.bf16 %v1023, %v1023
    %v1032 = vpack.c.bf16 %v1030, %v1030
    %v1035 = vunpack.c.l.b16 %v1031
    %v1036 = vunpack.c.l.b16 %v1032
    %v1037 = vsel %vm185, %v1036, %v1035
    %v1038 = vpack.c.b16 %v1037, %v1037
    %v1040 = vsel %vm200, %v1038, 0
    %1042 = vmatpush.bf16.msra.mxu0 0
    %1043 = vmatpush.bf16.msra.mxu0 0
    %1044 = vmatpush.bf16.msra.mxu0 0
    %1045 = vmatpush.bf16.msra.mxu0 0
    %1046 = vmatpush.bf16.msra.mxu0 0
    %1047 = vmatpush.bf16.msra.mxu0 0
    %1048 = vmatpush.bf16.msra.mxu0 %v328
    %1049 = vmatpush.bf16.msra.mxu0 %v327
    %1050 = vmatmul.bf16.gmra.mxu0 %v1040
    %v1051 = vpop.f32.mrf.mxu0
    %v1052 = vadd.f32 0.0, %v1051
    %v1053 = vpop.f32.mrf.mxu0
    %1054 = vdwg.mxu0
    %v1056 = vsel %vm200, %v929, 0
    %1058 = vmatpush.bf16.msra.mxu0 0
    %1059 = vmatpush.bf16.msra.mxu0 0
    %1060 = vmatpush.bf16.msra.mxu0 0
    %1061 = vmatpush.bf16.msra.mxu0 0
    %1062 = vmatpush.bf16.msra.mxu0 0
    %1063 = vmatpush.bf16.msra.mxu0 0
    %1064 = vmatpush.bf16.msra.mxu0 %v596
    %1065 = vmatpush.bf16.msra.mxu0 %v595
    %1066 = vmatmul.bf16.gmra.mxu0 %v1056
    %v1067 = vpop.f32.mrf.mxu0
    %v1068 = vadd.f32 %v1052, %v1067
    %v1069 = vpop.f32.mrf.mxu0
    %1070 = vdwg.mxu0
    %v1071 = vadd.f32 %v1068, %v349
    %1073 = vrot.lane.b32.xlu0 %v943, 96
    %v1074 = vpop.permute.xlu0 %1073
    %v1076 = vadd.f32 %v1071, %v1074
    %v1077 = vxor.u32 %v1076, 2147483648
    %v1078 = vmul.f32 %v1077, 1.442695
    %v1079 = vpow.pop %v1078
    %v1080 = vadd.f32 %v1079, 1.0
    %v1081 = vrcp.pop %v1080
    %v1082 = vmul.f32 %v1080, %v1081
    %v1083 = vsub.f32 1.0, %v1082
    %v1084 = vmul.f32 %v1081, %v1083
    %v1085 = vadd.f32 %v1081, %v1084
    %vm1086 = vweird.f32 %v1080
    %vm1087 = vweird.f32 %v1081
    %vm1088 = vmor %vm1086, %vm1087
    %v1089 = vsel %vm1088, %v1081, %v1085
    %v1090 = vand.u32 2147483647, %v1080
    %vm1091 = vcmp.eq.f32.partialorder %v1090, 8.507059e+37
    %v1092 = vand.u32 %v1080, 2147483648
    %v1093 = vor.u32 1.1754944e-38, %v1092
    %v1094 = vsel %vm1091, %v1093, %v1089
    %v1095 = vmul.f32 1.0, %v1094
    %1096 = vrot.lane.b32.xlu0 %v943, 32
    %v1097 = vpop.permute.xlu0 %1096
    %v1099 = vmul.f32 %v1095, %v1097
    %1101 = vrot.lane.b32.xlu0 %v1099, 64
    %v1102 = vpop.permute.xlu0 %1101
    %v1104 = vadd.f32 %v1071, %v1102
    %v1105 = vtanh.pop %v1104
    %v1106 = vsub.f32 1.0, %v1095
    %1108 = vrot.lane.b32.xlu0 %v1105, 96
    %v1109 = vpop.permute.xlu0 %1108
    %v1111 = vmul.f32 %v1106, %v1109
    %v1112 = vmul.f32 %v1095, %v885
    %v1113 = vadd.f32 %v1111, %v1112
    %v1114 = vpack.c.bf16 %v1113, %v1113
    %1116 = vrot.lane.b32.xlu0 %v1114, 96
    %v1117 = vpop.permute.xlu0 %1116
    %v1119 = vsel %vm200, %v1117, 0
    %1121 = vmatpush.bf16.msra.mxu0 0
    %1122 = vmatpush.bf16.msra.mxu0 0
    %1123 = vmatpush.bf16.msra.mxu0 0
    %1124 = vmatpush.bf16.msra.mxu0 0
    %1125 = vmatpush.bf16.msra.mxu0 0
    %1126 = vmatpush.bf16.msra.mxu0 0
    %1127 = vmatpush.bf16.msra.mxu0 %v418
    %1128 = vmatpush.bf16.msra.mxu0 %v417
    %1129 = vmatmul.bf16.gmra.mxu0 %v1119
    %v1130 = vpop.f32.mrf.mxu0
    %v1131 = vadd.f32 %v404, %v1130
    %v1132 = vpop.f32.mrf.mxu0
    %1133 = vdwg.mxu0
    %v1135 = vrot.slane %v675, 6
    %v1138 = vrot.slane %v903, 4
    %v1141 = vrot.slane %v1131, 2
    %v1143 = vsel %vm437, %v434, %v1135
    %vm1144 = vcmask 1043456
    %v1145 = vsel %vm1144, %v1143, %v1138
    %vm1146 = vcmask 1045504
    %v1147 = vsel %vm1146, %v1145, %v1141
    %1148 = vst [vmem:[#allocation14] sm:$0xff] %v1147
    // Predicated region
    $region74: #{tpu_custom_call.1} parent=1 // pred_check
      _
    $region75: #{tpu_custom_call.1} parent=1 // pred_check_branch
      %1150 = sbr.rel (0) target = $region77
    $region76: #{tpu_custom_call.1} parent=1 // pred_region
      %1152 = vsyncadd [#allocation4], 0
      %s1154 = sshll.u32 [#allocation14], 4
      %s1155 = int_to_ptr.vmem [resolvable:$true] %s1154
      %s1156 = sshll.u32 %s11, 4
      %s1157 = int_to_ptr.hbm [resolvable:$true] %s1156
      %1159 = dma.vmem_to_hbm [thread:$0]  %s1155, 128, %s1157, [#allocation4]
    $region77: #{tpu_custom_call.1} parent=1 // pred_fallthru
      _
    // Predicated region
    $region78: #{tpu_custom_call.1} parent=1 // pred_check
      _
    $region79: #{tpu_custom_call.1} parent=1 // pred_check_branch
      %1161 = sbr.rel (0) target = $region81
    $region80: #{tpu_custom_call.1} parent=1 // pred_region
      %1163 = dma.done [#allocation4], 128
    $region81: #{tpu_custom_call.1} parent=1 // pred_fallthru
      _
    %1164 = vsyncpa [#allocation3], 1
    %1165 = vsyncpa [#allocation6], 1
    %1166 = vsyncpa [#allocation9], 1
    %1167 = vsyncpa [#allocation12], 1
    %1168 = vsyncpa [#allocation4], 1

</llo_original>
